<compile_context>
chip_gen: v5e
topology: v5e:2x2
jax: 0.10.0
libtpu: 0.0.40
codegen_flags: <defaults>
</compile_context>

<pallas_src>
import math

import jax
import jax.numpy as jnp
from jax.experimental import pallas as pl
from jax.experimental.pallas import tpu as pltpu


def _round_up(x: int, m: int) -> int:
    return (x + m - 1) // m * m


def _tpu_generation() -> str:
    try:
        kind = jax.devices()[0].device_kind.lower()
    except Exception:
        return "unknown"
    if "v7" in kind or "7x" in kind:
        return "v7x"
    if "v6" in kind:
        return "v6e"
    if "v5" in kind:
        return "v5e"
    if "v4" in kind:
        return "v4"
    return "unknown"


# (token tile, intermediate tile, scoped-VMEM budget, physical VMEM cap)
_GEN_CONFIG = {
    "v5e":     dict(tm=512, ti=512, budget=100 << 20, phys=128 << 20),
    "v6e":     dict(tm=768, ti=256, budget=100 << 20, phys=128 << 20),
    "v7x":     dict(tm=384, ti=256, budget=56 << 20,  phys=64 << 20),
    "v4":      dict(tm=384, ti=256, budget=96 << 20,  phys=128 << 20),
    "unknown": dict(tm=384, ti=256, budget=56 << 20,  phys=64 << 20),
}


def _deepseek_mlp_kernel(x_ref, wg_ref, wu_ref, wd_ref, o_ref, acc_ref):
    # Grid = (reduction_shard r, token tile i, intermediate tile j); j is the
    # innermost "arbitrary" reduction axis (required by the init/finalize).
    # x_ref:   (TM, H)   token tile, resident across j
    # wg_ref:  (H, TI)   gate weight column tile (from merged gate_up)
    # wu_ref:  (H, TI)   up   weight column tile (from merged gate_up)
    # wd_ref:  (TI, H)   down weight row tile
    # o_ref:   (TM, H)   output token tile (leading shard dim squeezed away)
    # acc_ref: (TM, H)   f32 VMEM accumulator
    j = pl.program_id(2)
    last = pl.num_programs(2) - 1

    @pl.when(j == 0)
    def _init():
        acc_ref[...] = jnp.zeros_like(acc_ref)

    x = x_ref[...]
    # Two independent MXU dots against static weight tiles, f32 accumulation.
    gate = jnp.dot(x, wg_ref[...], preferred_element_type=jnp.float32)  # (TM, TI)
    up = jnp.dot(x, wu_ref[...], preferred_element_type=jnp.float32)    # (TM, TI)

    # SiluAndMul fused per intermediate tile; cast to the down-proj weight
    # dtype right before feeding the MXU again.
    act = (gate * jax.nn.sigmoid(gate)) * up                            # (TM, TI) f32
    delta = jnp.dot(act.astype(wd_ref.dtype), wd_ref[...],
                    preferred_element_type=jnp.float32)                 # (TM, H)

    @pl.when(j != last)
    def _accumulate():
        acc_ref[...] += delta

    # Fused finalize: avoid acc += delta followed by a re-read of acc.
    @pl.when(j == last)
    def _finalize():
        o_ref[...] = (acc_ref[...] + delta).astype(o_ref.dtype)


def deepseek_mlp(x, w_gate_up, w_down, *, tm=None, ti=None,
                 reduction_split=None, single_buffer_io=None,
                 vmem_limit_bytes=None):
    """Fused DeepSeek MLP forward.

    x:          [S, H]
    w_gate_up:  [H, 2*I]  merged column-parallel weight (gate cols 0:I, up I:2I)
    w_down:     [I, H]
    returns:    [S, H]
    """
    S, H = x.shape
    I = w_down.shape[0]
    assert w_gate_up.shape == (H, 2 * I)
    assert w_down.shape == (I, H)
    assert H % 128 == 0, "hidden_size must be a multiple of 128"
    assert I % 128 == 0, "intermediate_size must be a multiple of 128"

    gen = _tpu_generation()
    cfg = _GEN_CONFIG.get(gen, _GEN_CONFIG["unknown"])
    tm_target = cfg["tm"] if tm is None else tm
    ti_target = cfg["ti"] if ti is None else ti
    budget = cfg["budget"] if vmem_limit_bytes is None else vmem_limit_bytes
    phys = cfg["phys"] if vmem_limit_bytes is None else vmem_limit_bytes

    xb = jnp.dtype(x.dtype).itemsize
    wb = jnp.dtype(w_gate_up.dtype).itemsize

    # --- tile selection ------------------------------------------------------
    # Intermediate tile: largest multiple of 128 <= ti_target that divides I.
    ti_eff = 128
    for cand in range(128, min(ti_target, I) + 1, 128):
        if I % cand == 0:
            ti_eff = cand
    # Token tile: clamp to the (16-rounded) token count for small/decode
    # batches; pad tokens up to a tile multiple otherwise.
    tm_eff = min(tm_target, _round_up(S, 16))
    s_pad = _round_up(S, tm_eff)

    # Tentative reduction split. On v7x decode (single token tile) split the
    # intermediate axis across the 2 TensorCores so weights are streamed once
    # and both MXUs are busy; partial f32 outputs are summed outside.
    n_j = I // ti_eff
    n_i = s_pad // tm_eff
    if reduction_split is None:
        R = 2 if (gen == "v7x" and n_i == 1 and n_j % 2 == 0) else 1
    else:
        R = max(1, int(reduction_split))
    out_dtype = x.dtype if R == 1 else jnp.float32
    ob = jnp.dtype(out_dtype).itemsize

    io_bufs = 1 if single_buffer_io is True else 2

    def _footprint(tm_, ti_, io_):
        return (io_ * tm_ * H * xb          # x token tile(s)
                + io_ * tm_ * H * ob        # output token tile(s)
                + 2 * 2 * H * ti_ * wb      # gate + up weight tiles, double-buffered
                + 2 * ti_ * H * wb          # down weight tile, double-buffered
                + tm_ * H * 4)              # f32 accumulator scratch

    # --- VMEM fit loop: single-buffer io -> shrink ti -> shrink tm -----------
    # x/out block indices only change on the slow i axis, so their second
    # buffer is dead weight for the whole j loop; drop it first when tight.
    if single_buffer_io is None and _footprint(tm_eff, ti_eff, io_bufs) > budget:
        io_bufs = 1
    while _footprint(tm_eff, ti_eff, io_bufs) > budget:
        smaller = [c for c in range(128, ti_eff, 128) if I % c == 0]
        if not smaller:
            break
        ti_eff = smaller[-1]
    while _footprint(tm_eff, ti_eff, io_bufs) > budget and tm_eff > 128:
        tm_eff = max(128, tm_eff - 128)
        s_pad = _round_up(S, tm_eff)

    n_j = I // ti_eff
    n_i = s_pad // tm_eff
    while n_j % R:
        R -= 1
    if R == 1:
        out_dtype = x.dtype
        ob = jnp.dtype(out_dtype).itemsize
    n_jpc = n_j // R   # intermediate tiles per reduction shard

    vmem_limit = int(min(max(32 << 20,
                             _footprint(tm_eff, ti_eff, io_bufs) + (8 << 20)),
                         phys))

    # --- pad tokens -----------------------------------------------------------
    x_in = jnp.pad(x, ((0, s_pad - S), (0, 0))) if s_pad != S else x

    # --- BlockSpecs -----------------------------------------------------------
    io_kw = dict(pipeline_mode=pl.Buffered(1)) if io_bufs == 1 else {}
    x_spec = pl.BlockSpec((tm_eff, H), lambda r, i, j: (i, 0), **io_kw)
    # Merged gate_up weight indexed directly (no wrapper slice copies):
    # gate columns are blocks [0, I/ti), up columns are blocks [I/ti, 2I/ti).
    wg_spec = pl.BlockSpec((H, ti_eff),
                           lambda r, i, j, jpc=n_jpc: (0, r * jpc + j))
    wu_spec = pl.BlockSpec((H, ti_eff),
                           lambda r, i, j, jpc=n_jpc, nb=n_j: (0, nb + r * jpc + j))
    wd_spec = pl.BlockSpec((ti_eff, H),
                           lambda r, i, j, jpc=n_jpc: (r * jpc + j, 0))
    out_spec = pl.BlockSpec((None, tm_eff, H), lambda r, i, j: (r, i, 0), **io_kw)

    # --- cost estimate (weights re-streamed once per token tile) --------------
    cost = pl.CostEstimate(
        flops=6 * s_pad * H * I,                       # gate + up + down matmuls
        transcendentals=s_pad * I,                     # sigmoid
        bytes_accessed=int(R * s_pad * H * xb          # x read per (shard, token tile)
                           + n_i * 3 * H * I * wb      # weights per token tile
                           + R * s_pad * H * ob        # (partial) outputs written
                           + (s_pad - S) * H * xb),    # wrapper-side pad copy
    )

    out_partial = pl.pallas_call(
        _deepseek_mlp_kernel,
        out_shape=jax.ShapeDtypeStruct((R, s_pad, H), out_dtype),
        grid_spec=pltpu.PrefetchScalarGridSpec(
            num_scalar_prefetch=0,
            grid=(R, n_i, n_jpc),
            in_specs=[x_spec, wg_spec, wu_spec, wd_spec],
            out_specs=out_spec,
            scratch_shapes=[pltpu.VMEM((tm_eff, H), jnp.float32)],
        ),
        compiler_params=pltpu.CompilerParams(
            dimension_semantics=("parallel", "parallel", "arbitrary"),
            vmem_limit_bytes=vmem_limit,
        ),
        cost_estimate=cost,
    )(x_in, w_gate_up, w_gate_up, w_down)

    if R == 1:
        out = out_partial[0]
    else:
        out = out_partial.sum(axis=0).astype(x.dtype)
    if s_pad != S:
        out = out[:S, :]
    return out


def deepseek_mlp_forward(x, residual, w_gate_up, w_down, **kw):
    """Mirrors ParallelDeepseekMLP.forward(x, residual, attn_metadata=None)."""
    out = deepseek_mlp(x, w_gate_up, w_down, **kw)
    return out, residual


def _reference(x, w_gate_up, w_down):
    I = w_down.shape[0]
    xf = x.astype(jnp.float32)
    gate = xf @ w_gate_up[:, :I].astype(jnp.float32)
    up = xf @ w_gate_up[:, I:].astype(jnp.float32)
    act = (gate * jax.nn.sigmoid(gate)) * up
    out = act.astype(w_down.dtype).astype(jnp.float32) @ w_down.astype(jnp.float32)
    return out.astype(x.dtype)


if __name__ == "__main__":
    # Small, TPU-friendly shapes consistent with the module's forward:
    #   tokens S=40 (ragged -> exercises padding), hidden H=256,
    #   intermediate I=512 (multiple intermediate tiles -> exercises the
    #   accumulator and the merged-weight indexing).
    S, H, I = 40, 256, 512
    dtype = jnp.bfloat16

    key = jax.random.PRNGKey(0)
    kx, kr, kgu, kd = jax.random.split(key, 4)

    x = jax.random.normal(kx, (S, H), dtype=jnp.float32).astype(dtype)
    residual = jax.random.normal(kr, (S, H), dtype=jnp.float32).astype(dtype)
    w_gate_up = (jax.random.normal(kgu, (H, 2 * I), dtype=jnp.float32)
                 * (1.0 / math.sqrt(H))).astype(dtype)
    w_down = (jax.random.normal(kd, (I, H), dtype=jnp.float32)
              * (1.0 / math.sqrt(I))).astype(dtype)

    ref = _reference(x, w_gate_up, w_down)

    # Default path (auto-tuned per-generation tiles).
    out, res_out = deepseek_mlp_forward(x, residual, w_gate_up, w_down)
    out = jax.block_until_ready(out)
    res_out = jax.block_until_ready(res_out)
    assert out.shape == (S, H) and out.dtype == x.dtype
    assert jnp.allclose(out.astype(jnp.float32), ref.astype(jnp.float32),
                        atol=3e-2, rtol=3e-2), "kernel/reference mismatch"
    assert (res_out == residual).all()

    # Reduction-split path (v7x decode-style): intermediate axis sharded over
    # a leading parallel grid axis, f32 partials summed outside the kernel.
    out2, _ = deepseek_mlp_forward(x, residual, w_gate_up, w_down,
                                   reduction_split=2, ti=128)
    out2 = jax.block_until_ready(out2)
    assert out2.shape == (S, H) and out2.dtype == x.dtype
    assert jnp.allclose(out2.astype(jnp.float32), ref.astype(jnp.float32),
                        atol=3e-2, rtol=3e-2), "split-reduction mismatch"

    print("KERNEL_OK")
</pallas_src>

<mosaic_0001>
module attributes {stable_mosaic.version = 11 : i64} {
  func.func @_deepseek_mlp_kernel(%arg0: i32, %arg1: i32, %arg2: i32, %arg3: memref<48x256xbf16, #tpu.memory_space<vmem>>, %arg4: memref<256x256xbf16, #tpu.memory_space<vmem>>, %arg5: memref<256x256xbf16, #tpu.memory_space<vmem>>, %arg6: memref<256x256xbf16, #tpu.memory_space<vmem>>, %arg7: memref<1x48x256xbf16, #tpu.memory_space<vmem>>, %arg8: memref<48x256xf32, #tpu.memory_space<vmem>>) attributes {dimension_semantics = [#tpu.dimension_semantics<parallel>, #tpu.dimension_semantics<parallel>, #tpu.dimension_semantics<arbitrary>], iteration_bounds = array<i64: 1, 1, 2>, scalar_prefetch = 0 : i64, scratch_operands = 1 : i64, tpu.core_type = #tpu.core_type<tc>, window_params = [{transform_indices = @transform_0, window_bounds = array<i64: 48, 256>}, {transform_indices = @transform_1, window_bounds = array<i64: 256, 256>}, {transform_indices = @transform_2, window_bounds = array<i64: 256, 256>}, {transform_indices = @transform_3, window_bounds = array<i64: 256, 256>}, {transform_indices = @transform_4, window_bounds = array<i64: 1, 48, 256>}]} {
    %c0_i32 = arith.constant 0 : i32
    %0 = arith.cmpi eq, %arg2, %c0_i32 : i32
    %1 = arith.extui %0 : i1 to i32
    %c0_i32_0 = arith.constant 0 : i32
    %2 = arith.cmpi ne, %1, %c0_i32_0 : i32
    scf.if %2 {
      %cst_14 = arith.constant 0.000000e+00 : f32
      %24 = vector.broadcast %cst_14 : f32 to vector<48x256xf32>
      %c0_15 = arith.constant 0 : index
      %c0_16 = arith.constant 0 : index
      %25 = vector.load %arg8[%c0_15, %c0_16] : memref<48x256xf32, #tpu.memory_space<vmem>>, vector<48x256xf32>
      tpu.vector_store %arg8[%c0_15, %c0_16], %24 {strides = array<i32>} : memref<48x256xf32, #tpu.memory_space<vmem>>, vector<48x256xf32>,
    } else {
    }
    %c0 = arith.constant 0 : index
    %c0_1 = arith.constant 0 : index
    %3 = vector.load %arg3[%c0, %c0_1] : memref<48x256xbf16, #tpu.memory_space<vmem>>, vector<48x256xbf16>
    %c0_2 = arith.constant 0 : index
    %c0_3 = arith.constant 0 : index
    %4 = vector.load %arg4[%c0_2, %c0_3] : memref<256x256xbf16, #tpu.memory_space<vmem>>, vector<256x256xbf16>
    %cst = arith.constant dense<0.000000e+00> : vector<48x256xf32>
    %5 = tpu.matmul %3, %4, %cst {dimension_numbers = #tpu.dot_dimension_numbers<[1], [0], [0], [1], [0, 0, 1, 1], [], []>} : vector<48x256xbf16>, vector<256x256xbf16>, vector<48x256xf32> -> vector<48x256xf32>
    %c0_4 = arith.constant 0 : index
    %c0_5 = arith.constant 0 : index
    %6 = vector.load %arg5[%c0_4, %c0_5] : memref<256x256xbf16, #tpu.memory_space<vmem>>, vector<256x256xbf16>
    %cst_6 = arith.constant dense<0.000000e+00> : vector<48x256xf32>
    %7 = tpu.matmul %3, %6, %cst_6 {dimension_numbers = #tpu.dot_dimension_numbers<[1], [0], [0], [1], [0, 0, 1, 1], [], []>} : vector<48x256xbf16>, vector<256x256xbf16>, vector<48x256xf32> -> vector<48x256xf32>
    %8 = arith.negf %5 : vector<48x256xf32>
    %9 = math.exp %8 : vector<48x256xf32>
    %cst_7 = arith.constant 1.000000e+00 : f32
    %10 = vector.broadcast %cst_7 : f32 to vector<48x256xf32>
    %11 = arith.addf %10, %9 : vector<48x256xf32>
    %12 = arith.divf %10, %11 : vector<48x256xf32>
    %13 = arith.mulf %5, %12 : vector<48x256xf32>
    %14 = arith.mulf %13, %7 : vector<48x256xf32>
    %15 = arith.truncf %14 : vector<48x256xf32> to vector<48x256xbf16>
    %c0_8 = arith.constant 0 : index
    %c0_9 = arith.constant 0 : index
    %16 = vector.load %arg6[%c0_8, %c0_9] : memref<256x256xbf16, #tpu.memory_space<vmem>>, vector<256x256xbf16>
    %cst_10 = arith.constant dense<0.000000e+00> : vector<48x256xf32>
    %17 = tpu.matmul %15, %16, %cst_10 {dimension_numbers = #tpu.dot_dimension_numbers<[1], [0], [0], [1], [0, 0, 1, 1], [], []>} : vector<48x256xbf16>, vector<256x256xbf16>, vector<48x256xf32> -> vector<48x256xf32>
    %c1_i32 = arith.constant 1 : i32
    %18 = arith.cmpi ne, %arg2, %c1_i32 : i32
    %19 = arith.extui %18 : i1 to i32
    %c0_i32_11 = arith.constant 0 : i32
    %20 = arith.cmpi ne, %19, %c0_i32_11 : i32
    scf.if %20 {
      %c0_14 = arith.constant 0 : index
      %c0_15 = arith.constant 0 : index
      %24 = vector.load %arg8[%c0_14, %c0_15] : memref<48x256xf32, #tpu.memory_space<vmem>>, vector<48x256xf32>
      %25 = arith.addf %24, %17 : vector<48x256xf32>
      %c0_16 = arith.constant 0 : index
      %c0_17 = arith.constant 0 : index
      %26 = vector.load %arg8[%c0_16, %c0_17] : memref<48x256xf32, #tpu.memory_space<vmem>>, vector<48x256xf32>
      tpu.vector_store %arg8[%c0_16, %c0_17], %25 {strides = array<i32>} : memref<48x256xf32, #tpu.memory_space<vmem>>, vector<48x256xf32>,
    } else {
    }
    %c1_i32_12 = arith.constant 1 : i32
    %21 = arith.cmpi eq, %arg2, %c1_i32_12 : i32
    %22 = arith.extui %21 : i1 to i32
    %c0_i32_13 = arith.constant 0 : i32
    %23 = arith.cmpi ne, %22, %c0_i32_13 : i32
    scf.if %23 {
      %c0_14 = arith.constant 0 : index
      %c0_15 = arith.constant 0 : index
      %24 = vector.load %arg8[%c0_14, %c0_15] : memref<48x256xf32, #tpu.memory_space<vmem>>, vector<48x256xf32>
      %25 = arith.addf %24, %17 : vector<48x256xf32>
      %26 = arith.truncf %25 : vector<48x256xf32> to vector<48x256xbf16>
      %c0_16 = arith.constant 0 : index
      %c0_17 = arith.constant 0 : index
      %c0_18 = arith.constant 0 : index
      %27 = vector.load %arg7[%c0_16, %c0_17, %c0_18] : memref<1x48x256xbf16, #tpu.memory_space<vmem>>, vector<1x48x256xbf16>
      %28 = vector.shape_cast %27 : vector<1x48x256xbf16> to vector<48x256xbf16>
      %29 = vector.shape_cast %26 : vector<48x256xbf16> to vector<1x48x256xbf16>
      tpu.vector_store %arg7[%c0_16, %c0_17, %c0_18], %29 {strides = array<i32>} : memref<1x48x256xbf16, #tpu.memory_space<vmem>>, vector<1x48x256xbf16>,
    } else {
    }
    return
  }
  func.func @transform_0(%arg0: i32, %arg1: i32, %arg2: i32) -> (i32, i32) {
    %c0_i32 = arith.constant 0 : i32
    %c0_i32_0 = arith.constant 0 : i32
    return %arg1, %c0_i32 : i32, i32
  }
  func.func @transform_1(%arg0: i32, %arg1: i32, %arg2: i32) -> (i32, i32) {
    %c2_i32 = arith.constant 2 : i32
    %0 = arith.muli %arg0, %c2_i32 : i32
    %1 = arith.addi %0, %arg2 : i32
    %c0_i32 = arith.constant 0 : i32
    %c0_i32_0 = arith.constant 0 : i32
    return %c0_i32, %1 : i32, i32
  }
  func.func @transform_2(%arg0: i32, %arg1: i32, %arg2: i32) -> (i32, i32) {
    %c2_i32 = arith.constant 2 : i32
    %0 = arith.muli %arg0, %c2_i32 : i32
    %c2_i32_0 = arith.constant 2 : i32
    %1 = arith.addi %c2_i32_0, %0 : i32
    %2 = arith.addi %1, %arg2 : i32
    %c0_i32 = arith.constant 0 : i32
    %c0_i32_1 = arith.constant 0 : i32
    return %c0_i32, %2 : i32, i32
  }
  func.func @transform_3(%arg0: i32, %arg1: i32, %arg2: i32) -> (i32, i32) {
    %c2_i32 = arith.constant 2 : i32
    %0 = arith.muli %arg0, %c2_i32 : i32
    %1 = arith.addi %0, %arg2 : i32
    %c0_i32 = arith.constant 0 : i32
    %c0_i32_0 = arith.constant 0 : i32
    return %1, %c0_i32 : i32, i32
  }
  func.func @transform_4(%arg0: i32, %arg1: i32, %arg2: i32) -> (i32, i32, i32) {
    %c0_i32 = arith.constant 0 : i32
    %c0_i32_0 = arith.constant 0 : i32
    return %arg0, %arg1, %c0_i32 : i32, i32, i32
  }
}

</mosaic_0001>

<llo_original>
// kernel: tpu_custom_call.1
$region0: #{tpu_custom_call.1}
  #allocation0 [shape = 'u32[]', space=smem, size = 0x4, offset = 0x4, fixed_abs, tag = 'smem constant byte address 0x4 - core index']
  #allocation1 [shape = 'u32[72,128]{1,0:T(1,128)}', space=vmem, size = 0x9000, scoped, tag = 'internal scratch']
  #allocation2 [shape = 'f32[48,256]{1,0:T(8,128)}', space=vmem, size = 0xc000, scoped, tag = 'scratch operand']
  %s0 = inlined_call_operand.hbm [shape: bf16[48,256], index: 0, kind: input, shape index: {}]
  %s1 = inlined_call_operand.hbm [shape: bf16[256,1024], index: 1, kind: input, shape index: {}]
  %s2 = inlined_call_operand.hbm [shape: bf16[256,1024], index: 2, kind: input, shape index: {}]
  %s3 = inlined_call_operand.hbm [shape: bf16[512,256], index: 3, kind: input, shape index: {}]
  %s4 = inlined_call_operand.hbm [shape: bf16[1,48,256], index: 4, kind: output, shape index: {}]
  %s5 = sld [smem:[#allocation0]]
  $region77: #{tpu_custom_call.1} parent=0
    _
  %s7 = ssub.s32 1, %s5
  %s8 = scalar_select 0, %s7, %s5
  $region1: #{tpu_custom_call.1} parent=0
    #allocation3 [shape = 'u8[24576]{0}', space=vmem, size = 0x6000, scoped, tag = 'input window, operand 0, single buffered']
    #allocation4 [shape = 's32[2]{0}', space=sflag, size = 0x8, scoped, tag = 'scoped memory for tpu_custom_call.1']
    #allocation5 [shape = 's32[2]{0}', space=sflag, size = 0x8, scoped, tag = 'scoped memory for tpu_custom_call.1']
    #allocation6 [shape = 'u8[262144]{0}', space=vmem, size = 0x40000, scoped, tag = 'input window, operand 1']
    #allocation7 [shape = 's32[2]{0}', space=sflag, size = 0x8, scoped, tag = 'scoped memory for tpu_custom_call.1']
    #allocation8 [shape = 'u8[262144]{0}', space=vmem, size = 0x40000, scoped, tag = 'input window, operand 2']
    #allocation9 [shape = 'u8[262144]{0}', space=vmem, size = 0x40000, scoped, tag = 'input window, operand 3']
    #allocation10 [shape = 's32[2]{0}', space=sflag, size = 0x8, scoped, tag = 'scoped memory for tpu_custom_call.1']
    #allocation11 [shape = 'u8[24576]{0}', space=vmem, size = 0x6000, scoped, tag = 'output window, operand 0, single buffered']
    %9 = vsyncpa [#allocation4], 0
    %10 = vsyncpa [#allocation7], 0
    %s11 = scalar_lea.sflag [#allocation7], 1
    %12 = vsyncpa %s11, 0
    %13 = vsyncpa [#allocation10], 0
    %s14 = scalar_lea.sflag [#allocation10], 1
    %15 = vsyncpa %s14, 0
    %16 = vsyncpa [#allocation5], 0
    loop: start=0, step=1, limit=4
    $region2: #{tpu_custom_call.1} parent=1 // loop_pre_header
      _
    $region3: #{tpu_custom_call.1} parent=1 // loop_header
      %s18 = sphi 0, %s22
      %p19 = scmp.ge.s32.totalorder %s18, 4
      %s25 = sphi 0, %s44
      %s26 = sphi 0, %s40
      %s27 = sphi 0, %s36
      %s28 = sphi 0, %s25
      %s29 = sphi 0, %s26
      %s30 = sphi 0, %s27
      %s31 = sphi 0, %s28
      %s32 = sphi 0, %s29
      %s33 = sphi 0, %s30
      %s47 = sphi 0, %s49
      %s50 = sphi 0, %s47
      %s51 = sphi 0, %s50
      %s67 = sphi 0, %s51
      %s77 = sphi 0, %s79
      %s80 = sphi 0, %s77
      %s81 = sphi 0, %s80
      %s97 = sphi 0, %s81
      %s109 = sphi 0, %s111
      %s112 = sphi 0, %s109
      %s113 = sphi 0, %s112
      %s129 = sphi 0, %s113
      %s139 = sphi 0, %s141
      %s142 = sphi 0, %s139
      %s143 = sphi 0, %s142
      %s159 = sphi 0, %s143
      %s167 = sphi 0, %s169
      %s170 = sphi 0, %s167
      %s171 = sphi 0, %s170
      %s187 = sphi 0, %s171
    $region4: #{tpu_custom_call.1} parent=1 // loop_header_branch
      %21 = sbr.rel (%p19) target = $region8
    $region5: #{tpu_custom_call.1} parent=1 // loop_body
      %s23 = ssub.s32 %s18, 1
      %s24 = ssub.s32 %s18, 2
      %s34 = sadd.s32 1, %s27
      %p35 = scmp.ge.s32.totalorder %s34, 2
      %s36 = scalar_select %p35, 0, %s34
      %s37 = sadd.s32 1, %s26
      %s38 = scalar_select %p35, %s37, %s26
      %p39 = scmp.ge.s32.totalorder %s38, 1
      %s40 = scalar_select %p39, 0, %s38
      %s41 = sadd.s32 1, %s25
      %s42 = scalar_select %p39, %s41, %s25
      %p43 = scmp.ge.s32.totalorder %s42, 1
      %s44 = scalar_select %p43, 0, %s42
      %s45 = ssub.s32 %s26, %s40
      %p46 = scmp.eq.s32.totalorder %s45, 0
      %s48 = sadd.s32 %s47, 1
      %s49 = scalar_select %p46, %s47, %s48
      %p52 = pneg %p46
      %p53 = scmp.eq.s32.totalorder %s18, 1
      %p54 = por %p52, %p53
      %p55 = scmp.ne.s32.totalorder %s47, %s50
      %p56 = scmp.eq.s32.totalorder %s18, 0
      %p57 = por %p55, %p56
      %p58 = scmp.ne.s32.totalorder %s47, %s50
      %p59 = scmp.eq.s32.totalorder %s23, 1
      %p60 = por %p58, %p59
      %p61 = scmp.ne.s32.totalorder %s50, %s51
      %p62 = scmp.eq.s32.totalorder %s23, 0
      %p63 = por %p61, %p62
      %p64 = scmp.ne.s32.totalorder %s50, %s51
      %p65 = scmp.eq.s32.totalorder %s24, 1
      %p66 = por %p64, %p65
      %p68 = scmp.ne.s32.totalorder %s51, %s67
      %p69 = scmp.eq.s32.totalorder %s24, 0
      %p70 = por %p68, %p69
      %s71 = smul.u32 %s25, 2
      %s72 = sadd.s32 %s71, %s27
      %s73 = smul.u32 %s44, 2
      %s74 = sadd.s32 %s73, %s36
      %s75 = ssub.s32 %s72, %s74
      %p76 = scmp.eq.s32.totalorder %s75, 0
      %s78 = sadd.s32 %s77, 1
      %s79 = scalar_select %p76, %s77, %s78
      %p82 = pneg %p76
      %p83 = scmp.eq.s32.totalorder %s18, 1
      %p84 = por %p82, %p83
      %p85 = scmp.ne.s32.totalorder %s77, %s80
      %p86 = scmp.eq.s32.totalorder %s18, 0
      %p87 = por %p85, %p86
      %p88 = scmp.ne.s32.totalorder %s77, %s80
      %p89 = scmp.eq.s32.totalorder %s23, 1
      %p90 = por %p88, %p89
      %p91 = scmp.ne.s32.totalorder %s80, %s81
      %p92 = scmp.eq.s32.totalorder %s23, 0
      %p93 = por %p91, %p92
      %p94 = scmp.ne.s32.totalorder %s80, %s81
      %p95 = scmp.eq.s32.totalorder %s24, 1
      %p96 = por %p94, %p95
      %p98 = scmp.ne.s32.totalorder %s81, %s97
      %p99 = scmp.eq.s32.totalorder %s24, 0
      %p100 = por %p98, %p99
      %s101 = smul.u32 %s25, 2
      %s102 = sadd.s32 %s101, 2
      %s103 = sadd.s32 %s102, %s27
      %s104 = smul.u32 %s44, 2
      %s105 = sadd.s32 %s104, 2
      %s106 = sadd.s32 %s105, %s36
      %s107 = ssub.s32 %s103, %s106
      %p108 = scmp.eq.s32.totalorder %s107, 0
      %s110 = sadd.s32 %s109, 1
      %s111 = scalar_select %p108, %s109, %s110
      %p114 = pneg %p108
      %p115 = scmp.eq.s32.totalorder %s18, 1
      %p116 = por %p114, %p115
      %p117 = scmp.ne.s32.totalorder %s109, %s112
      %p118 = scmp.eq.s32.totalorder %s18, 0
      %p119 = por %p117, %p118
      %p120 = scmp.ne.s32.totalorder %s109, %s112
      %p121 = scmp.eq.s32.totalorder %s23, 1
      %p122 = por %p120, %p121
      %p123 = scmp.ne.s32.totalorder %s112, %s113
      %p124 = scmp.eq.s32.totalorder %s23, 0
      %p125 = por %p123, %p124
      %p126 = scmp.ne.s32.totalorder %s112, %s113
      %p127 = scmp.eq.s32.totalorder %s24, 1
      %p128 = por %p126, %p127
      %p130 = scmp.ne.s32.totalorder %s113, %s129
      %p131 = scmp.eq.s32.totalorder %s24, 0
      %p132 = por %p130, %p131
      %s133 = smul.u32 %s25, 2
      %s134 = sadd.s32 %s133, %s27
      %s135 = smul.u32 %s44, 2
      %s136 = sadd.s32 %s135, %s36
      %s137 = ssub.s32 %s134, %s136
      %p138 = scmp.eq.s32.totalorder %s137, 0
      %s140 = sadd.s32 %s139, 1
      %s141 = scalar_select %p138, %s139, %s140
      %p144 = pneg %p138
      %p145 = scmp.eq.s32.totalorder %s18, 1
      %p146 = por %p144, %p145
      %p147 = scmp.ne.s32.totalorder %s139, %s142
      %p148 = scmp.eq.s32.totalorder %s18, 0
      %p149 = por %p147, %p148
      %p150 = scmp.ne.s32.totalorder %s139, %s142
      %p151 = scmp.eq.s32.totalorder %s23, 1
      %p152 = por %p150, %p151
      %p153 = scmp.ne.s32.totalorder %s142, %s143
      %p154 = scmp.eq.s32.totalorder %s23, 0
      %p155 = por %p153, %p154
      %p156 = scmp.ne.s32.totalorder %s142, %s143
      %p157 = scmp.eq.s32.totalorder %s24, 1
      %p158 = por %p156, %p157
      %p160 = scmp.ne.s32.totalorder %s143, %s159
      %p161 = scmp.eq.s32.totalorder %s24, 0
      %p162 = por %p160, %p161
      %s163 = ssub.s32 %s25, %s44
      %s164 = ssub.s32 %s26, %s40
      %s165 = sor.u32 %s163, %s164
      %p166 = scmp.eq.s32.totalorder %s165, 0
      %s168 = sadd.s32 %s167, 1
      %s169 = scalar_select %p166, %s167, %s168
      %p172 = pneg %p166
      %p173 = scmp.eq.s32.totalorder %s18, 1
      %p174 = por %p172, %p173
      %p175 = scmp.ne.s32.totalorder %s167, %s170
      %p176 = scmp.eq.s32.totalorder %s18, 0
      %p177 = por %p175, %p176
      %p178 = scmp.ne.s32.totalorder %s167, %s170
      %p179 = scmp.eq.s32.totalorder %s23, 1
      %p180 = por %p178, %p179
      %p181 = scmp.ne.s32.totalorder %s170, %s171
      %p182 = scmp.eq.s32.totalorder %s23, 0
      %p183 = por %p181, %p182
      %p184 = scmp.ne.s32.totalorder %s170, %s171
      %p185 = scmp.eq.s32.totalorder %s24, 1
      %p186 = por %p184, %p185
      %p188 = scmp.ne.s32.totalorder %s171, %s187
      %p189 = scmp.eq.s32.totalorder %s24, 0
      %p190 = por %p188, %p189
      %p191 = scmp.le.s32.totalorder 1, %s18
      %p192 = scmp.lt.s32.totalorder %s18, 3
      %p193 = pnand %p191, %p192
      %p194 = pneg %p193
      // Predicated region
      $region9: #{tpu_custom_call.1} parent=5 // pred_check
        _
      $region10: #{tpu_custom_call.1} parent=5 // pred_check_branch
        %196 = sbr.rel (%p193) target = $region12
      $region11: #{tpu_custom_call.1} parent=5 // pred_region
        %s197 = ssub.s32 %s18, 1
        // Predicated region
        $region13: #{tpu_custom_call.1} parent=11 // pred_check
          %p198 = pneg %p63
        $region14: #{tpu_custom_call.1} parent=11 // pred_check_branch
          %200 = sbr.rel (%p198) target = $region16
        $region15: #{tpu_custom_call.1} parent=11 // pred_region
          %s201 = smul.u32 6, %s29
          %203 = vsyncadd [#allocation4], 0
          %s204 = smul.addr %s201, 2
          %s205 = smul.addr %s204, 4
          %s206 = scalar_lea.hbm %s0, %s205
          %s207 = sshll.u32 %s206, 4
          %s208 = int_to_ptr.hbm [resolvable:$true] %s207
          %s209 = sshll.u32 [#allocation3], 4
          %s210 = int_to_ptr.vmem [resolvable:$true] %s209
          %215 = dma.hbm_to_vmem [thread:$0]  %s208, 768, %s210, [#allocation4], 128, 128, 8
        $region16: #{tpu_custom_call.1} parent=11 // pred_fallthru
          _
      $region12: #{tpu_custom_call.1} parent=5 // pred_fallthru
        _
      %p216 = scmp.lt.s32.totalorder %s18, 2
      // Predicated region
      $region17: #{tpu_custom_call.1} parent=5 // pred_check
        %p217 = pneg %p216
      $region18: #{tpu_custom_call.1} parent=5 // pred_check_branch
        %219 = sbr.rel (%p217) target = $region20
      $region19: #{tpu_custom_call.1} parent=5 // pred_region
        // Predicated region
        $region21: #{tpu_custom_call.1} parent=19 // pred_check
          %p220 = pneg %p87
        $region22: #{tpu_custom_call.1} parent=19 // pred_check_branch
          %222 = sbr.rel (%p220) target = $region24
        $region23: #{tpu_custom_call.1} parent=19 // pred_region
          %s223 = sand.u32 %s18, 1
          %s224 = scalar_lea.sflag [#allocation7], %s223
          %s225 = sand.u32 %s77, 1
          %s226 = smul.addr %s225, 256
          %s227 = scalar_lea.vmem [#allocation6], %s226
          %s228 = smul.u32 %s25, 2
          %s229 = sadd.s32 %s228, %s27
          %s230 = smul.u32 2, %s229
          %232 = vsyncadd %s224, 0
          %s233 = smul.addr %s230, 4
          %s234 = scalar_lea.hbm %s1, %s233
          %s235 = sshll.u32 %s234, 4
          %s236 = int_to_ptr.hbm [resolvable:$true] %s235
          %s237 = sshll.u32 %s227, 4
          %s238 = int_to_ptr.vmem [resolvable:$true] %s237
          %243 = dma.hbm_to_vmem [thread:$0]  %s236, 4096, %s238, %s224, 512, 128, 8
        $region24: #{tpu_custom_call.1} parent=19 // pred_fallthru
          _
        // Predicated region
        $region25: #{tpu_custom_call.1} parent=19 // pred_check
          %p244 = pneg %p119
        $region26: #{tpu_custom_call.1} parent=19 // pred_check_branch
          %246 = sbr.rel (%p244) target = $region28
        $region27: #{tpu_custom_call.1} parent=19 // pred_region
          %s247 = sand.u32 %s18, 1
          %s248 = scalar_lea.sflag [#allocation7], %s247
          %s249 = sand.u32 %s109, 1
          %s250 = smul.addr %s249, 256
          %s251 = scalar_lea.vmem [#allocation8], %s250
          %s252 = smul.u32 %s25, 2
          %s253 = sadd.s32 %s252, 2
          %s254 = sadd.s32 %s253, %s27
          %s255 = smul.u32 2, %s254
          %257 = vsyncadd %s248, 0
          %s258 = smul.addr %s255, 4
          %s259 = scalar_lea.hbm %s2, %s258
          %s260 = sshll.u32 %s259, 4
          %s261 = int_to_ptr.hbm [resolvable:$true] %s260
          %s262 = sshll.u32 %s251, 4
          %s263 = int_to_ptr.vmem [resolvable:$true] %s262
          %268 = dma.hbm_to_vmem [thread:$0]  %s261, 4096, %s263, %s248, 512, 128, 8
        $region28: #{tpu_custom_call.1} parent=19 // pred_fallthru
          _
        // Predicated region
        $region29: #{tpu_custom_call.1} parent=19 // pred_check
          %p269 = pneg %p149
        $region30: #{tpu_custom_call.1} parent=19 // pred_check_branch
          %271 = sbr.rel (%p269) target = $region32
        $region31: #{tpu_custom_call.1} parent=19 // pred_region
          %s272 = sand.u32 %s139, 1
          %s273 = scalar_lea.sflag [#allocation10], %s272
          %s274 = sand.u32 %s139, 1
          %s275 = smul.addr %s274, 256
          %s276 = scalar_lea.vmem [#allocation9], %s275
          %s277 = smul.u32 %s25, 2
          %s278 = sadd.s32 %s277, %s27
          %s279 = smul.u32 32, %s278
          %281 = vsyncadd %s273, 0
          %s282 = smul.addr %s279, 2
          %s283 = smul.addr %s282, 4
          %s284 = scalar_lea.hbm %s3, %s283
          %s285 = sshll.u32 %s284, 4
          %s286 = int_to_ptr.hbm [resolvable:$true] %s285
          %s287 = sshll.u32 %s276, 4
          %s288 = int_to_ptr.vmem [resolvable:$true] %s287
          %293 = dma.hbm_to_vmem [thread:$0]  %s286, 4096, %s288, %s273, 128, 128, 8
        $region32: #{tpu_custom_call.1} parent=19 // pred_fallthru
          _
      $region20: #{tpu_custom_call.1} parent=5 // pred_fallthru
        _
      %p294 = scmp.le.s32.totalorder 1, %s18
      %p295 = scmp.lt.s32.totalorder %s18, 3
      %p296 = pnand %p294, %p295
      %p297 = pneg %p296
      // Predicated region
      $region33: #{tpu_custom_call.1} parent=5 // pred_check
        _
      $region34: #{tpu_custom_call.1} parent=5 // pred_check_branch
        %299 = sbr.rel (%p296) target = $region36
      $region35: #{tpu_custom_call.1} parent=5 // pred_region
        %s300 = ssub.s32 %s18, 1
        // Predicated region
        $region37: #{tpu_custom_call.1} parent=35 // pred_check
          %p301 = pneg %p63
        $region38: #{tpu_custom_call.1} parent=35 // pred_check_branch
          %303 = sbr.rel (%p301) target = $region40
        $region39: #{tpu_custom_call.1} parent=35 // pred_region
          %305 = dma.done [#allocation4], 768
        $region40: #{tpu_custom_call.1} parent=35 // pred_fallthru
          _
        %s306 = sand.u32 %s23, 1
        %s307 = scalar_lea.sflag [#allocation7], %s306
        %s308 = sand.u32 %s80, 1
        %s309 = smul.addr %s308, 256
        %s310 = scalar_lea.vmem [#allocation6], %s309
        // Predicated region
        $region41: #{tpu_custom_call.1} parent=35 // pred_check
          %p311 = pneg %p93
        $region42: #{tpu_custom_call.1} parent=35 // pred_check_branch
          %313 = sbr.rel (%p311) target = $region44
        $region43: #{tpu_custom_call.1} parent=35 // pred_region
          %315 = dma.done %s307, 4096
        $region44: #{tpu_custom_call.1} parent=35 // pred_fallthru
          _
        %s316 = sand.u32 %s23, 1
        %s317 = scalar_lea.sflag [#allocation7], %s316
        %s318 = sand.u32 %s112, 1
        %s319 = smul.addr %s318, 256
        %s320 = scalar_lea.vmem [#allocation8], %s319
        // Predicated region
        $region45: #{tpu_custom_call.1} parent=35 // pred_check
          %p321 = pneg %p125
        $region46: #{tpu_custom_call.1} parent=35 // pred_check_branch
          %323 = sbr.rel (%p321) target = $region48
        $region47: #{tpu_custom_call.1} parent=35 // pred_region
          %325 = dma.done %s317, 4096
        $region48: #{tpu_custom_call.1} parent=35 // pred_fallthru
          _
        %s326 = sand.u32 %s142, 1
        %s327 = scalar_lea.sflag [#allocation10], %s326
        %s328 = sand.u32 %s142, 1
        %s329 = smul.addr %s328, 256
        %s330 = scalar_lea.vmem [#allocation9], %s329
        // Predicated region
        $region49: #{tpu_custom_call.1} parent=35 // pred_check
          %p331 = pneg %p155
        $region50: #{tpu_custom_call.1} parent=35 // pred_check_branch
          %333 = sbr.rel (%p331) target = $region52
        $region51: #{tpu_custom_call.1} parent=35 // pred_region
          %335 = dma.done %s327, 4096
        $region52: #{tpu_custom_call.1} parent=35 // pred_fallthru
          _
        %p336 = pneg %p63
        %p337 = pneg %p60
        %s338 = sand.u32 %s23, 1
        %s339 = scalar_lea.sflag [#allocation7], %s338
        %s340 = sand.u32 %s80, 1
        %s341 = smul.addr %s340, 256
        %s342 = scalar_lea.vmem [#allocation6], %s341
        %p343 = pneg %p93
        %p344 = pneg %p90
        %s345 = sand.u32 %s23, 1
        %s346 = scalar_lea.sflag [#allocation7], %s345
        %s347 = sand.u32 %s112, 1
        %s348 = smul.addr %s347, 256
        %s349 = scalar_lea.vmem [#allocation8], %s348
        %p350 = pneg %p125
        %p351 = pneg %p122
        %s352 = sand.u32 %s142, 1
        %s353 = scalar_lea.sflag [#allocation10], %s352
        %s354 = sand.u32 %s142, 1
        %s355 = smul.addr %s354, 256
        %s356 = scalar_lea.vmem [#allocation9], %s355
        %p357 = pneg %p155
        %p358 = pneg %p152
        %p359 = pneg %p183
        %p360 = pneg %p180
        %s361 = smul.u32 6, %s29
        %s362 = smul.u32 %s28, 2
        %s363 = sadd.s32 %s362, %s30
        %s364 = smul.u32 2, %s363
        %s365 = smul.u32 %s28, 2
        %s366 = sadd.s32 %s365, 2
        %s367 = sadd.s32 %s366, %s30
        %s368 = smul.u32 2, %s367
        %s369 = smul.u32 %s28, 2
        %s370 = sadd.s32 %s369, %s30
        %s371 = smul.u32 32, %s370
        %s372 = smul.u32 6, %s29
        %p373 = scmp.eq.s32.totalorder %s30, 0
        // Predicated region
        $region53: #{tpu_custom_call.1} parent=35 // pred_check
          %p374 = pneg %p373
        $region54: #{tpu_custom_call.1} parent=35 // pred_check_branch
          %376 = sbr.rel (%p374) target = $region56
        $region55: #{tpu_custom_call.1} parent=35 // pred_region
          %377 = vst [vmem:[#allocation2] sm:$0xff] 0.0
          %378 = vst [vmem:[#allocation2 + $0x8] sm:$0xff] 0.0
          %379 = vst [vmem:[#allocation2 + $0x10] sm:$0xff] 0.0
          %380 = vst [vmem:[#allocation2 + $0x18] sm:$0xff] 0.0
          %381 = vst [vmem:[#allocation2 + $0x20] sm:$0xff] 0.0
          %382 = vst [vmem:[#allocation2 + $0x28] sm:$0xff] 0.0
          %383 = vst [vmem:[#allocation2 + $0x30] sm:$0xff] 0.0
          %384 = vst [vmem:[#allocation2 + $0x38] sm:$0xff] 0.0
          %385 = vst [vmem:[#allocation2 + $0x40] sm:$0xff] 0.0
          %386 = vst [vmem:[#allocation2 + $0x48] sm:$0xff] 0.0
          %387 = vst [vmem:[#allocation2 + $0x50] sm:$0xff] 0.0
          %388 = vst [vmem:[#allocation2 + $0x58] sm:$0xff] 0.0
        $region56: #{tpu_custom_call.1} parent=35 // pred_fallthru
          _
        %v389 = vld [vmem:[#allocation3] sm:$0xff]
        %v390 = vld [vmem:[#allocation3 + $0x8] sm:$0xff]
        %v391 = vld [vmem:[#allocation3 + $0x10] sm:$0xff]
        %v392 = vld [vmem:[#allocation3 + $0x18] sm:$0xff]
        %v393 = vld [vmem:[#allocation3 + $0x20] sm:$0xff]
        %v394 = vld [vmem:[#allocation3 + $0x28] sm:$0xff]
        %v395 = vld [vmem:[%s310] sm:$0xff]
        %v396 = vld [vmem:[%s310 + $0x8] sm:$0xff]
        %v397 = vld [vmem:[%s310 + $0x10] sm:$0xff]
        %v398 = vld [vmem:[%s310 + $0x18] sm:$0xff]
        %v399 = vld [vmem:[%s310 + $0x20] sm:$0xff]
        %v400 = vld [vmem:[%s310 + $0x28] sm:$0xff]
        %v401 = vld [vmem:[%s310 + $0x30] sm:$0xff]
        %v402 = vld [vmem:[%s310 + $0x38] sm:$0xff]
        %v403 = vld [vmem:[%s310 + $0x40] sm:$0xff]
        %v404 = vld [vmem:[%s310 + $0x48] sm:$0xff]
        %v405 = vld [vmem:[%s310 + $0x50] sm:$0xff]
        %v406 = vld [vmem:[%s310 + $0x58] sm:$0xff]
        %v407 = vld [vmem:[%s310 + $0x60] sm:$0xff]
        %v408 = vld [vmem:[%s310 + $0x68] sm:$0xff]
        %v409 = vld [vmem:[%s310 + $0x70] sm:$0xff]
        %v410 = vld [vmem:[%s310 + $0x78] sm:$0xff]
        %v411 = vld [vmem:[%s310 + $0x80] sm:$0xff]
        %v412 = vld [vmem:[%s310 + $0x88] sm:$0xff]
        %v413 = vld [vmem:[%s310 + $0x90] sm:$0xff]
        %v414 = vld [vmem:[%s310 + $0x98] sm:$0xff]
        %v415 = vld [vmem:[%s310 + $0xa0] sm:$0xff]
        %v416 = vld [vmem:[%s310 + $0xa8] sm:$0xff]
        %v417 = vld [vmem:[%s310 + $0xb0] sm:$0xff]
        %v418 = vld [vmem:[%s310 + $0xb8] sm:$0xff]
        %v419 = vld [vmem:[%s310 + $0xc0] sm:$0xff]
        %v420 = vld [vmem:[%s310 + $0xc8] sm:$0xff]
        %v421 = vld [vmem:[%s310 + $0xd0] sm:$0xff]
        %v422 = vld [vmem:[%s310 + $0xd8] sm:$0xff]
        %v423 = vld [vmem:[%s310 + $0xe0] sm:$0xff]
        %v424 = vld [vmem:[%s310 + $0xe8] sm:$0xff]
        %v425 = vld [vmem:[%s310 + $0xf0] sm:$0xff]
        %v426 = vld [vmem:[%s310 + $0xf8] sm:$0xff]
        %v433 = vunpack.c.l.b16 %v389
        %v434 = vunpack.c.h.b16 %v389
        %v435 = vunpack.c.l.b16 %v390
        %v436 = vunpack.c.h.b16 %v390
        %v437 = vunpack.c.l.b16 %v391
        %v438 = vunpack.c.h.b16 %v391
        %v439 = vunpack.c.l.b16 %v392
        %v440 = vunpack.c.h.b16 %v392
        %v441 = vunpack.c.l.b16 %v393
        %v442 = vunpack.c.h.b16 %v393
        %v443 = vunpack.c.l.b16 %v394
        %v444 = vunpack.c.h.b16 %v394
        %v445 = vpack.c.b16 %v435, %v433
        %v446 = vpack.c.b16 %v436, %v434
        %v447 = vpack.c.b16 %v439, %v437
        %v448 = vpack.c.b16 %v440, %v438
        %v449 = vpack.c.b16 %v443, %v441
        %v450 = vpack.c.b16 %v444, %v442
        %v489 = vunpack.c.l.b16 %v395
        %v490 = vunpack.c.h.b16 %v395
        %v491 = vunpack.c.l.b16 %v396
        %v492 = vunpack.c.h.b16 %v396
        %v493 = vunpack.c.l.b16 %v397
        %v494 = vunpack.c.h.b16 %v397
        %v495 = vunpack.c.l.b16 %v398
        %v496 = vunpack.c.h.b16 %v398
        %v497 = vunpack.c.l.b16 %v399
        %v498 = vunpack.c.h.b16 %v399
        %v499 = vunpack.c.l.b16 %v400
        %v500 = vunpack.c.h.b16 %v400
        %v501 = vunpack.c.l.b16 %v401
        %v502 = vunpack.c.h.b16 %v401
        %v503 = vunpack.c.l.b16 %v402
        %v504 = vunpack.c.h.b16 %v402
        %v505 = vunpack.c.l.b16 %v403
        %v506 = vunpack.c.h.b16 %v403
        %v507 = vunpack.c.l.b16 %v404
        %v508 = vunpack.c.h.b16 %v404
        %v509 = vunpack.c.l.b16 %v405
        %v510 = vunpack.c.h.b16 %v405
        %v511 = vunpack.c.l.b16 %v406
        %v512 = vunpack.c.h.b16 %v406
        %v513 = vunpack.c.l.b16 %v407
        %v514 = vunpack.c.h.b16 %v407
        %v515 = vunpack.c.l.b16 %v408
        %v516 = vunpack.c.h.b16 %v408
        %v517 = vunpack.c.l.b16 %v409
        %v518 = vunpack.c.h.b16 %v409
        %v519 = vunpack.c.l.b16 %v410
        %v520 = vunpack.c.h.b16 %v410
        %v521 = vunpack.c.l.b16 %v411
        %v522 = vunpack.c.h.b16 %v411
        %v523 = vunpack.c.l.b16 %v412
        %v524 = vunpack.c.h.b16 %v412
        %v525 = vunpack.c.l.b16 %v413
        %v526 = vunpack.c.h.b16 %v413
        %v527 = vunpack.c.l.b16 %v414
        %v528 = vunpack.c.h.b16 %v414
        %v529 = vunpack.c.l.b16 %v415
        %v530 = vunpack.c.h.b16 %v415
        %v531 = vunpack.c.l.b16 %v416
        %v532 = vunpack.c.h.b16 %v416
        %v533 = vunpack.c.l.b16 %v417
        %v534 = vunpack.c.h.b16 %v417
        %v535 = vunpack.c.l.b16 %v418
        %v536 = vunpack.c.h.b16 %v418
        %v537 = vunpack.c.l.b16 %v419
        %v538 = vunpack.c.h.b16 %v419
        %v539 = vunpack.c.l.b16 %v420
        %v540 = vunpack.c.h.b16 %v420
        %v541 = vunpack.c.l.b16 %v421
        %v542 = vunpack.c.h.b16 %v421
        %v543 = vunpack.c.l.b16 %v422
        %v544 = vunpack.c.h.b16 %v422
        %v545 = vunpack.c.l.b16 %v423
        %v546 = vunpack.c.h.b16 %v423
        %v547 = vunpack.c.l.b16 %v424
        %v548 = vunpack.c.h.b16 %v424
        %v549 = vunpack.c.l.b16 %v425
        %v550 = vunpack.c.h.b16 %v425
        %v551 = vunpack.c.l.b16 %v426
        %v552 = vunpack.c.h.b16 %v426
        %v553 = vpack.c.b16 %v491, %v489
        %v554 = vpack.c.b16 %v492, %v490
        %v555 = vpack.c.b16 %v495, %v493
        %v556 = vpack.c.b16 %v496, %v494
        %v557 = vpack.c.b16 %v499, %v497
        %v558 = vpack.c.b16 %v500, %v498
        %v559 = vpack.c.b16 %v503, %v501
        %v560 = vpack.c.b16 %v504, %v502
        %v561 = vpack.c.b16 %v507, %v505
        %v562 = vpack.c.b16 %v508, %v506
        %v563 = vpack.c.b16 %v511, %v509
        %v564 = vpack.c.b16 %v512, %v510
        %v565 = vpack.c.b16 %v515, %v513
        %v566 = vpack.c.b16 %v516, %v514
        %v567 = vpack.c.b16 %v519, %v517
        %v568 = vpack.c.b16 %v520, %v518
        %v569 = vpack.c.b16 %v523, %v521
        %v570 = vpack.c.b16 %v524, %v522
        %v571 = vpack.c.b16 %v527, %v525
        %v572 = vpack.c.b16 %v528, %v526
        %v573 = vpack.c.b16 %v531, %v529
        %v574 = vpack.c.b16 %v532, %v530
        %v575 = vpack.c.b16 %v535, %v533
        %v576 = vpack.c.b16 %v536, %v534
        %v577 = vpack.c.b16 %v539, %v537
        %v578 = vpack.c.b16 %v540, %v538
        %v579 = vpack.c.b16 %v543, %v541
        %v580 = vpack.c.b16 %v544, %v542
        %v581 = vpack.c.b16 %v547, %v545
        %v582 = vpack.c.b16 %v548, %v546
        %v583 = vpack.c.b16 %v551, %v549
        %v584 = vpack.c.b16 %v552, %v550
        %617 = vmatpush.bf16.msra.mxu0 %v567
        %618 = vmatpush.bf16.msra.mxu0 %v565
        %619 = vmatpush.bf16.msra.mxu0 %v563
        %620 = vmatpush.bf16.msra.mxu0 %v561
        %621 = vmatpush.bf16.msra.mxu0 %v559
        %622 = vmatpush.bf16.msra.mxu0 %v557
        %623 = vmatpush.bf16.msra.mxu0 %v555
        %624 = vmatpush.bf16.msra.mxu0 %v553
        %625 = vmatmul.bf16.gmra.mxu0 %v445
        %v626 = vpop.f32.mrf.mxu0
        %v627 = vadd.f32 0.0, %v626
        %v628 = vpop.f32.mrf.mxu0
        %v629 = vadd.f32 0.0, %v628
        %630 = vmatmul.bf16.gmra.mxu0 %v447
        %v631 = vpop.f32.mrf.mxu0
        %v632 = vadd.f32 0.0, %v631
        %v633 = vpop.f32.mrf.mxu0
        %v634 = vadd.f32 0.0, %v633
        %635 = vmatmul.bf16.gmra.mxu0 %v449
        %v636 = vpop.f32.mrf.mxu0
        %v637 = vadd.f32 0.0, %v636
        %v638 = vpop.f32.mrf.mxu0
        %v639 = vadd.f32 0.0, %v638
        %640 = vdwg.mxu0
        %641 = vmatpush.bf16.msra.mxu0 %v583
        %642 = vmatpush.bf16.msra.mxu0 %v581
        %643 = vmatpush.bf16.msra.mxu0 %v579
        %644 = vmatpush.bf16.msra.mxu0 %v577
        %645 = vmatpush.bf16.msra.mxu0 %v575
        %646 = vmatpush.bf16.msra.mxu0 %v573
        %647 = vmatpush.bf16.msra.mxu0 %v571
        %648 = vmatpush.bf16.msra.mxu0 %v569
        %649 = vmatmul.bf16.gmra.mxu0 %v446
        %v650 = vpop.f32.mrf.mxu0
        %v651 = vadd.f32 %v627, %v650
        %v652 = vpop.f32.mrf.mxu0
        %v653 = vadd.f32 %v629, %v652
        %654 = vmatmul.bf16.gmra.mxu0 %v448
        %v655 = vpop.f32.mrf.mxu0
        %v656 = vadd.f32 %v632, %v655
        %v657 = vpop.f32.mrf.mxu0
        %v658 = vadd.f32 %v634, %v657
        %659 = vmatmul.bf16.gmra.mxu0 %v450
        %v660 = vpop.f32.mrf.mxu0
        %v661 = vadd.f32 %v637, %v660
        %v662 = vpop.f32.mrf.mxu0
        %v663 = vadd.f32 %v639, %v662
        %664 = vdwg.mxu0
        %665 = vmatpush.bf16.msra.mxu0 %v568
        %666 = vmatpush.bf16.msra.mxu0 %v566
        %667 = vmatpush.bf16.msra.mxu0 %v564
        %668 = vmatpush.bf16.msra.mxu0 %v562
        %669 = vmatpush.bf16.msra.mxu0 %v560
        %670 = vmatpush.bf16.msra.mxu0 %v558
        %671 = vmatpush.bf16.msra.mxu0 %v556
        %672 = vmatpush.bf16.msra.mxu0 %v554
        %673 = vmatmul.bf16.gmra.mxu0 %v445
        %v674 = vpop.f32.mrf.mxu0
        %v675 = vadd.f32 0.0, %v674
        %v676 = vpop.f32.mrf.mxu0
        %v677 = vadd.f32 0.0, %v676
        %678 = vmatmul.bf16.gmra.mxu0 %v447
        %v679 = vpop.f32.mrf.mxu0
        %v680 = vadd.f32 0.0, %v679
        %v681 = vpop.f32.mrf.mxu0
        %v682 = vadd.f32 0.0, %v681
        %683 = vmatmul.bf16.gmra.mxu0 %v449
        %v684 = vpop.f32.mrf.mxu0
        %v685 = vadd.f32 0.0, %v684
        %v686 = vpop.f32.mrf.mxu0
        %v687 = vadd.f32 0.0, %v686
        %688 = vdwg.mxu0
        %689 = vmatpush.bf16.msra.mxu0 %v584
        %690 = vmatpush.bf16.msra.mxu0 %v582
        %691 = vmatpush.bf16.msra.mxu0 %v580
        %692 = vmatpush.bf16.msra.mxu0 %v578
        %693 = vmatpush.bf16.msra.mxu0 %v576
        %694 = vmatpush.bf16.msra.mxu0 %v574
        %695 = vmatpush.bf16.msra.mxu0 %v572
        %696 = vmatpush.bf16.msra.mxu0 %v570
        %697 = vmatmul.bf16.gmra.mxu0 %v446
        %v698 = vpop.f32.mrf.mxu0
        %v699 = vadd.f32 %v675, %v698
        %v700 = vpop.f32.mrf.mxu0
        %v701 = vadd.f32 %v677, %v700
        %702 = vmatmul.bf16.gmra.mxu0 %v448
        %v703 = vpop.f32.mrf.mxu0
        %v704 = vadd.f32 %v680, %v703
        %v705 = vpop.f32.mrf.mxu0
        %v706 = vadd.f32 %v682, %v705
        %707 = vmatmul.bf16.gmra.mxu0 %v450
        %v708 = vpop.f32.mrf.mxu0
        %v709 = vadd.f32 %v685, %v708
        %v710 = vpop.f32.mrf.mxu0
        %v711 = vadd.f32 %v687, %v710
        %712 = vdwg.mxu0
        %v713 = vld [vmem:[%s320] sm:$0xff]
        %v714 = vld [vmem:[%s320 + $0x8] sm:$0xff]
        %v715 = vld [vmem:[%s320 + $0x10] sm:$0xff]
        %v716 = vld [vmem:[%s320 + $0x18] sm:$0xff]
        %v717 = vld [vmem:[%s320 + $0x20] sm:$0xff]
        %v718 = vld [vmem:[%s320 + $0x28] sm:$0xff]
        %v719 = vld [vmem:[%s320 + $0x30] sm:$0xff]
        %v720 = vld [vmem:[%s320 + $0x38] sm:$0xff]
        %v721 = vld [vmem:[%s320 + $0x40] sm:$0xff]
        %v722 = vld [vmem:[%s320 + $0x48] sm:$0xff]
        %v723 = vld [vmem:[%s320 + $0x50] sm:$0xff]
        %v724 = vld [vmem:[%s320 + $0x58] sm:$0xff]
        %v725 = vld [vmem:[%s320 + $0x60] sm:$0xff]
        %v726 = vld [vmem:[%s320 + $0x68] sm:$0xff]
        %v727 = vld [vmem:[%s320 + $0x70] sm:$0xff]
        %v728 = vld [vmem:[%s320 + $0x78] sm:$0xff]
        %v729 = vld [vmem:[%s320 + $0x80] sm:$0xff]
        %v730 = vld [vmem:[%s320 + $0x88] sm:$0xff]
        %v731 = vld [vmem:[%s320 + $0x90] sm:$0xff]
        %v732 = vld [vmem:[%s320 + $0x98] sm:$0xff]
        %v733 = vld [vmem:[%s320 + $0xa0] sm:$0xff]
        %v734 = vld [vmem:[%s320 + $0xa8] sm:$0xff]
        %v735 = vld [vmem:[%s320 + $0xb0] sm:$0xff]
        %v736 = vld [vmem:[%s320 + $0xb8] sm:$0xff]
        %v737 = vld [vmem:[%s320 + $0xc0] sm:$0xff]
        %v738 = vld [vmem:[%s320 + $0xc8] sm:$0xff]
        %v739 = vld [vmem:[%s320 + $0xd0] sm:$0xff]
        %v740 = vld [vmem:[%s320 + $0xd8] sm:$0xff]
        %v741 = vld [vmem:[%s320 + $0xe0] sm:$0xff]
        %v742 = vld [vmem:[%s320 + $0xe8] sm:$0xff]
        %v743 = vld [vmem:[%s320 + $0xf0] sm:$0xff]
        %v744 = vld [vmem:[%s320 + $0xf8] sm:$0xff]
        %v777 = vunpack.c.l.b16 %v713
        %v778 = vunpack.c.h.b16 %v713
        %v779 = vunpack.c.l.b16 %v714
        %v780 = vunpack.c.h.b16 %v714
        %v781 = vunpack.c.l.b16 %v715
        %v782 = vunpack.c.h.b16 %v715
        %v783 = vunpack.c.l.b16 %v716
        %v784 = vunpack.c.h.b16 %v716
        %v785 = vunpack.c.l.b16 %v717
        %v786 = vunpack.c.h.b16 %v717
        %v787 = vunpack.c.l.b16 %v718
        %v788 = vunpack.c.h.b16 %v718
        %v789 = vunpack.c.l.b16 %v719
        %v790 = vunpack.c.h.b16 %v719
        %v791 = vunpack.c.l.b16 %v720
        %v792 = vunpack.c.h.b16 %v720
        %v793 = vunpack.c.l.b16 %v721
        %v794 = vunpack.c.h.b16 %v721
        %v795 = vunpack.c.l.b16 %v722
        %v796 = vunpack.c.h.b16 %v722
        %v797 = vunpack.c.l.b16 %v723
        %v798 = vunpack.c.h.b16 %v723
        %v799 = vunpack.c.l.b16 %v724
        %v800 = vunpack.c.h.b16 %v724
        %v801 = vunpack.c.l.b16 %v725
        %v802 = vunpack.c.h.b16 %v725
        %v803 = vunpack.c.l.b16 %v726
        %v804 = vunpack.c.h.b16 %v726
        %v805 = vunpack.c.l.b16 %v727
        %v806 = vunpack.c.h.b16 %v727
        %v807 = vunpack.c.l.b16 %v728
        %v808 = vunpack.c.h.b16 %v728
        %v809 = vunpack.c.l.b16 %v729
        %v810 = vunpack.c.h.b16 %v729
        %v811 = vunpack.c.l.b16 %v730
        %v812 = vunpack.c.h.b16 %v730
        %v813 = vunpack.c.l.b16 %v731
        %v814 = vunpack.c.h.b16 %v731
        %v815 = vunpack.c.l.b16 %v732
        %v816 = vunpack.c.h.b16 %v732
        %v817 = vunpack.c.l.b16 %v733
        %v818 = vunpack.c.h.b16 %v733
        %v819 = vunpack.c.l.b16 %v734
        %v820 = vunpack.c.h.b16 %v734
        %v821 = vunpack.c.l.b16 %v735
        %v822 = vunpack.c.h.b16 %v735
        %v823 = vunpack.c.l.b16 %v736
        %v824 = vunpack.c.h.b16 %v736
        %v825 = vunpack.c.l.b16 %v737
        %v826 = vunpack.c.h.b16 %v737
        %v827 = vunpack.c.l.b16 %v738
        %v828 = vunpack.c.h.b16 %v738
        %v829 = vunpack.c.l.b16 %v739
        %v830 = vunpack.c.h.b16 %v739
        %v831 = vunpack.c.l.b16 %v740
        %v832 = vunpack.c.h.b16 %v740
        %v833 = vunpack.c.l.b16 %v741
        %v834 = vunpack.c.h.b16 %v741
        %v835 = vunpack.c.l.b16 %v742
        %v836 = vunpack.c.h.b16 %v742
        %v837 = vunpack.c.l.b16 %v743
        %v838 = vunpack.c.h.b16 %v743
        %v839 = vunpack.c.l.b16 %v744
        %v840 = vunpack.c.h.b16 %v744
        %v841 = vpack.c.b16 %v779, %v777
        %v842 = vpack.c.b16 %v780, %v778
        %v843 = vpack.c.b16 %v783, %v781
        %v844 = vpack.c.b16 %v784, %v782
        %v845 = vpack.c.b16 %v787, %v785
        %v846 = vpack.c.b16 %v788, %v786
        %v847 = vpack.c.b16 %v791, %v789
        %v848 = vpack.c.b16 %v792, %v790
        %v849 = vpack.c.b16 %v795, %v793
        %v850 = vpack.c.b16 %v796, %v794
        %v851 = vpack.c.b16 %v799, %v797
        %v852 = vpack.c.b16 %v800, %v798
        %v853 = vpack.c.b16 %v803, %v801
        %v854 = vpack.c.b16 %v804, %v802
        %v855 = vpack.c.b16 %v807, %v805
        %v856 = vpack.c.b16 %v808, %v806
        %v857 = vpack.c.b16 %v811, %v809
        %v858 = vpack.c.b16 %v812, %v810
        %v859 = vpack.c.b16 %v815, %v813
        %v860 = vpack.c.b16 %v816, %v814
        %v861 = vpack.c.b16 %v819, %v817
        %v862 = vpack.c.b16 %v820, %v818
        %v863 = vpack.c.b16 %v823, %v821
        %v864 = vpack.c.b16 %v824, %v822
        %v865 = vpack.c.b16 %v827, %v825
        %v866 = vpack.c.b16 %v828, %v826
        %v867 = vpack.c.b16 %v831, %v829
        %v868 = vpack.c.b16 %v832, %v830
        %v869 = vpack.c.b16 %v835, %v833
        %v870 = vpack.c.b16 %v836, %v834
        %v871 = vpack.c.b16 %v839, %v837
        %v872 = vpack.c.b16 %v840, %v838
        %905 = vmatpush.bf16.msra.mxu0 %v855
        %906 = vmatpush.bf16.msra.mxu0 %v853
        %907 = vmatpush.bf16.msra.mxu0 %v851
        %908 = vmatpush.bf16.msra.mxu0 %v849
        %909 = vmatpush.bf16.msra.mxu0 %v847
        %910 = vmatpush.bf16.msra.mxu0 %v845
        %911 = vmatpush.bf16.msra.mxu0 %v843
        %912 = vmatpush.bf16.msra.mxu0 %v841
        %913 = vmatmul.bf16.gmra.mxu0 %v445
        %v914 = vpop.f32.mrf.mxu0
        %v915 = vadd.f32 0.0, %v914
        %v916 = vpop.f32.mrf.mxu0
        %v917 = vadd.f32 0.0, %v916
        %918 = vmatmul.bf16.gmra.mxu0 %v447
        %v919 = vpop.f32.mrf.mxu0
        %v920 = vadd.f32 0.0, %v919
        %v921 = vpop.f32.mrf.mxu0
        %v922 = vadd.f32 0.0, %v921
        %923 = vmatmul.bf16.gmra.mxu0 %v449
        %v924 = vpop.f32.mrf.mxu0
        %v925 = vadd.f32 0.0, %v924
        %v926 = vpop.f32.mrf.mxu0
        %v927 = vadd.f32 0.0, %v926
        %928 = vdwg.mxu0
        %929 = vmatpush.bf16.msra.mxu0 %v871
        %930 = vmatpush.bf16.msra.mxu0 %v869
        %931 = vmatpush.bf16.msra.mxu0 %v867
        %932 = vmatpush.bf16.msra.mxu0 %v865
        %933 = vmatpush.bf16.msra.mxu0 %v863
        %934 = vmatpush.bf16.msra.mxu0 %v861
        %935 = vmatpush.bf16.msra.mxu0 %v859
        %936 = vmatpush.bf16.msra.mxu0 %v857
        %937 = vmatmul.bf16.gmra.mxu0 %v446
        %v938 = vpop.f32.mrf.mxu0
        %v939 = vadd.f32 %v915, %v938
        %v940 = vpop.f32.mrf.mxu0
        %v941 = vadd.f32 %v917, %v940
        %942 = vmatmul.bf16.gmra.mxu0 %v448
        %v943 = vpop.f32.mrf.mxu0
        %v944 = vadd.f32 %v920, %v943
        %v945 = vpop.f32.mrf.mxu0
        %v946 = vadd.f32 %v922, %v945
        %947 = vmatmul.bf16.gmra.mxu0 %v450
        %v948 = vpop.f32.mrf.mxu0
        %v949 = vadd.f32 %v925, %v948
        %v950 = vpop.f32.mrf.mxu0
        %v951 = vadd.f32 %v927, %v950
        %952 = vdwg.mxu0
        %953 = vmatpush.bf16.msra.mxu0 %v856
        %954 = vmatpush.bf16.msra.mxu0 %v854
        %955 = vmatpush.bf16.msra.mxu0 %v852
        %956 = vmatpush.bf16.msra.mxu0 %v850
        %957 = vmatpush.bf16.msra.mxu0 %v848
        %958 = vmatpush.bf16.msra.mxu0 %v846
        %959 = vmatpush.bf16.msra.mxu0 %v844
        %960 = vmatpush.bf16.msra.mxu0 %v842
        %961 = vmatmul.bf16.gmra.mxu0 %v445
        %v962 = vpop.f32.mrf.mxu0
        %v963 = vadd.f32 0.0, %v962
        %v964 = vpop.f32.mrf.mxu0
        %v965 = vadd.f32 0.0, %v964
        %966 = vmatmul.bf16.gmra.mxu0 %v447
        %v967 = vpop.f32.mrf.mxu0
        %v968 = vadd.f32 0.0, %v967
        %v969 = vpop.f32.mrf.mxu0
        %v970 = vadd.f32 0.0, %v969
        %971 = vmatmul.bf16.gmra.mxu0 %v449
        %v972 = vpop.f32.mrf.mxu0
        %v973 = vadd.f32 0.0, %v972
        %v974 = vpop.f32.mrf.mxu0
        %v975 = vadd.f32 0.0, %v974
        %976 = vdwg.mxu0
        %977 = vmatpush.bf16.msra.mxu0 %v872
        %978 = vmatpush.bf16.msra.mxu0 %v870
        %979 = vmatpush.bf16.msra.mxu0 %v868
        %980 = vmatpush.bf16.msra.mxu0 %v866
        %981 = vmatpush.bf16.msra.mxu0 %v864
        %982 = vmatpush.bf16.msra.mxu0 %v862
        %983 = vmatpush.bf16.msra.mxu0 %v860
        %984 = vmatpush.bf16.msra.mxu0 %v858
        %985 = vmatmul.bf16.gmra.mxu0 %v446
        %v986 = vpop.f32.mrf.mxu0
        %v987 = vadd.f32 %v963, %v986
        %v988 = vpop.f32.mrf.mxu0
        %v989 = vadd.f32 %v965, %v988
        %990 = vmatmul.bf16.gmra.mxu0 %v448
        %v991 = vpop.f32.mrf.mxu0
        %v992 = vadd.f32 %v968, %v991
        %v993 = vpop.f32.mrf.mxu0
        %v994 = vadd.f32 %v970, %v993
        %995 = vmatmul.bf16.gmra.mxu0 %v450
        %v996 = vpop.f32.mrf.mxu0
        %v997 = vadd.f32 %v973, %v996
        %v998 = vpop.f32.mrf.mxu0
        %v999 = vadd.f32 %v975, %v998
        %1000 = vdwg.mxu0
        %v1001 = vxor.u32 %v651, 2147483648
        %v1002 = vxor.u32 %v699, 2147483648
        %v1003 = vxor.u32 %v653, 2147483648
        %v1004 = vxor.u32 %v701, 2147483648
        %v1005 = vxor.u32 %v656, 2147483648
        %v1006 = vxor.u32 %v704, 2147483648
        %v1007 = vxor.u32 %v658, 2147483648
        %v1008 = vxor.u32 %v706, 2147483648
        %v1009 = vxor.u32 %v661, 2147483648
        %v1010 = vxor.u32 %v709, 2147483648
        %v1011 = vxor.u32 %v663, 2147483648
        %v1012 = vxor.u32 %v711, 2147483648
        %v1013 = vmul.f32 %v1001, 1.442695
        %v1014 = vpow.pop %v1013
        %v1015 = vmul.f32 %v1002, 1.442695
        %v1016 = vpow.pop %v1015
        %v1017 = vmul.f32 %v1003, 1.442695
        %v1018 = vpow.pop %v1017
        %v1019 = vmul.f32 %v1004, 1.442695
        %v1020 = vpow.pop %v1019
        %v1021 = vmul.f32 %v1005, 1.442695
        %v1022 = vpow.pop %v1021
        %v1023 = vmul.f32 %v1006, 1.442695
        %v1024 = vpow.pop %v1023
        %v1025 = vmul.f32 %v1007, 1.442695
        %v1026 = vpow.pop %v1025
        %v1027 = vmul.f32 %v1008, 1.442695
        %v1028 = vpow.pop %v1027
        %v1029 = vmul.f32 %v1009, 1.442695
        %v1030 = vpow.pop %v1029
        %v1031 = vmul.f32 %v1010, 1.442695
        %v1032 = vpow.pop %v1031
        %v1033 = vmul.f32 %v1011, 1.442695
        %v1034 = vpow.pop %v1033
        %v1035 = vmul.f32 %v1012, 1.442695
        %v1036 = vpow.pop %v1035
        %v1037 = vadd.f32 %v1014, 1.0
        %v1038 = vadd.f32 %v1016, 1.0
        %v1039 = vadd.f32 %v1018, 1.0
        %v1040 = vadd.f32 %v1020, 1.0
        %v1041 = vadd.f32 %v1022, 1.0
        %v1042 = vadd.f32 %v1024, 1.0
        %v1043 = vadd.f32 %v1026, 1.0
        %v1044 = vadd.f32 %v1028, 1.0
        %v1045 = vadd.f32 %v1030, 1.0
        %v1046 = vadd.f32 %v1032, 1.0
        %v1047 = vadd.f32 %v1034, 1.0
        %v1048 = vadd.f32 %v1036, 1.0
        %v1049 = vrcp.pop %v1037
        %v1050 = vmul.f32 %v1037, %v1049
        %v1051 = vsub.f32 1.0, %v1050
        %v1052 = vmul.f32 %v1049, %v1051
        %v1053 = vadd.f32 %v1049, %v1052
        %vm1054 = vweird.f32 %v1037
        %vm1055 = vweird.f32 %v1049
        %vm1056 = vmor %vm1054, %vm1055
        %v1057 = vsel %vm1056, %v1049, %v1053
        %v1058 = vand.u32 2147483647, %v1037
        %vm1059 = vcmp.eq.f32.partialorder %v1058, 8.507059e+37
        %v1060 = vand.u32 %v1037, 2147483648
        %v1061 = vor.u32 1.1754944e-38, %v1060
        %v1062 = vsel %vm1059, %v1061, %v1057
        %v1063 = vmul.f32 1.0, %v1062
        %v1064 = vrcp.pop %v1038
        %v1065 = vmul.f32 %v1038, %v1064
        %v1066 = vsub.f32 1.0, %v1065
        %v1067 = vmul.f32 %v1064, %v1066
        %v1068 = vadd.f32 %v1064, %v1067
        %vm1069 = vweird.f32 %v1038
        %vm1070 = vweird.f32 %v1064
        %vm1071 = vmor %vm1069, %vm1070
        %v1072 = vsel %vm1071, %v1064, %v1068
        %v1073 = vand.u32 2147483647, %v1038
        %vm1074 = vcmp.eq.f32.partialorder %v1073, 8.507059e+37
        %v1075 = vand.u32 %v1038, 2147483648
        %v1076 = vor.u32 1.1754944e-38, %v1075
        %v1077 = vsel %vm1074, %v1076, %v1072
        %v1078 = vmul.f32 1.0, %v1077
        %v1079 = vrcp.pop %v1039
        %v1080 = vmul.f32 %v1039, %v1079
        %v1081 = vsub.f32 1.0, %v1080
        %v1082 = vmul.f32 %v1079, %v1081
        %v1083 = vadd.f32 %v1079, %v1082
        %vm1084 = vweird.f32 %v1039
        %vm1085 = vweird.f32 %v1079
        %vm1086 = vmor %vm1084, %vm1085
        %v1087 = vsel %vm1086, %v1079, %v1083
        %v1088 = vand.u32 2147483647, %v1039
        %vm1089 = vcmp.eq.f32.partialorder %v1088, 8.507059e+37
        %v1090 = vand.u32 %v1039, 2147483648
        %v1091 = vor.u32 1.1754944e-38, %v1090
        %v1092 = vsel %vm1089, %v1091, %v1087
        %v1093 = vmul.f32 1.0, %v1092
        %v1094 = vrcp.pop %v1040
        %v1095 = vmul.f32 %v1040, %v1094
        %v1096 = vsub.f32 1.0, %v1095
        %v1097 = vmul.f32 %v1094, %v1096
        %v1098 = vadd.f32 %v1094, %v1097
        %vm1099 = vweird.f32 %v1040
        %vm1100 = vweird.f32 %v1094
        %vm1101 = vmor %vm1099, %vm1100
        %v1102 = vsel %vm1101, %v1094, %v1098
        %v1103 = vand.u32 2147483647, %v1040
        %vm1104 = vcmp.eq.f32.partialorder %v1103, 8.507059e+37
        %v1105 = vand.u32 %v1040, 2147483648
        %v1106 = vor.u32 1.1754944e-38, %v1105
        %v1107 = vsel %vm1104, %v1106, %v1102
        %v1108 = vmul.f32 1.0, %v1107
        %v1109 = vrcp.pop %v1041
        %v1110 = vmul.f32 %v1041, %v1109
        %v1111 = vsub.f32 1.0, %v1110
        %v1112 = vmul.f32 %v1109, %v1111
        %v1113 = vadd.f32 %v1109, %v1112
        %vm1114 = vweird.f32 %v1041
        %vm1115 = vweird.f32 %v1109
        %vm1116 = vmor %vm1114, %vm1115
        %v1117 = vsel %vm1116, %v1109, %v1113
        %v1118 = vand.u32 2147483647, %v1041
        %vm1119 = vcmp.eq.f32.partialorder %v1118, 8.507059e+37
        %v1120 = vand.u32 %v1041, 2147483648
        %v1121 = vor.u32 1.1754944e-38, %v1120
        %v1122 = vsel %vm1119, %v1121, %v1117
        %v1123 = vmul.f32 1.0, %v1122
        %v1124 = vrcp.pop %v1042
        %v1125 = vmul.f32 %v1042, %v1124
        %v1126 = vsub.f32 1.0, %v1125
        %v1127 = vmul.f32 %v1124, %v1126
        %v1128 = vadd.f32 %v1124, %v1127
        %vm1129 = vweird.f32 %v1042
        %vm1130 = vweird.f32 %v1124
        %vm1131 = vmor %vm1129, %vm1130
        %v1132 = vsel %vm1131, %v1124, %v1128
        %v1133 = vand.u32 2147483647, %v1042
        %vm1134 = vcmp.eq.f32.partialorder %v1133, 8.507059e+37
        %v1135 = vand.u32 %v1042, 2147483648
        %v1136 = vor.u32 1.1754944e-38, %v1135
        %v1137 = vsel %vm1134, %v1136, %v1132
        %v1138 = vmul.f32 1.0, %v1137
        %v1139 = vrcp.pop %v1043
        %v1140 = vmul.f32 %v1043, %v1139
        %v1141 = vsub.f32 1.0, %v1140
        %v1142 = vmul.f32 %v1139, %v1141
        %v1143 = vadd.f32 %v1139, %v1142
        %vm1144 = vweird.f32 %v1043
        %vm1145 = vweird.f32 %v1139
        %vm1146 = vmor %vm1144, %vm1145
        %v1147 = vsel %vm1146, %v1139, %v1143
        %v1148 = vand.u32 2147483647, %v1043
        %vm1149 = vcmp.eq.f32.partialorder %v1148, 8.507059e+37
        %v1150 = vand.u32 %v1043, 2147483648
        %v1151 = vor.u32 1.1754944e-38, %v1150
        %v1152 = vsel %vm1149, %v1151, %v1147
        %v1153 = vmul.f32 1.0, %v1152
        %v1154 = vrcp.pop %v1044
        %v1155 = vmul.f32 %v1044, %v1154
        %v1156 = vsub.f32 1.0, %v1155
        %v1157 = vmul.f32 %v1154, %v1156
        %v1158 = vadd.f32 %v1154, %v1157
        %vm1159 = vweird.f32 %v1044
        %vm1160 = vweird.f32 %v1154
        %vm1161 = vmor %vm1159, %vm1160
        %v1162 = vsel %vm1161, %v1154, %v1158
        %v1163 = vand.u32 2147483647, %v1044
        %vm1164 = vcmp.eq.f32.partialorder %v1163, 8.507059e+37
        %v1165 = vand.u32 %v1044, 2147483648
        %v1166 = vor.u32 1.1754944e-38, %v1165
        %v1167 = vsel %vm1164, %v1166, %v1162
        %v1168 = vmul.f32 1.0, %v1167
        %v1169 = vrcp.pop %v1045
        %v1170 = vmul.f32 %v1045, %v1169
        %v1171 = vsub.f32 1.0, %v1170
        %v1172 = vmul.f32 %v1169, %v1171
        %v1173 = vadd.f32 %v1169, %v1172
        %vm1174 = vweird.f32 %v1045
        %vm1175 = vweird.f32 %v1169
        %vm1176 = vmor %vm1174, %vm1175
        %v1177 = vsel %vm1176, %v1169, %v1173
        %v1178 = vand.u32 2147483647, %v1045
        %vm1179 = vcmp.eq.f32.partialorder %v1178, 8.507059e+37
        %v1180 = vand.u32 %v1045, 2147483648
        %v1181 = vor.u32 1.1754944e-38, %v1180
        %v1182 = vsel %vm1179, %v1181, %v1177
        %v1183 = vmul.f32 1.0, %v1182
        %v1184 = vrcp.pop %v1046
        %v1185 = vmul.f32 %v1046, %v1184
        %v1186 = vsub.f32 1.0, %v1185
        %v1187 = vmul.f32 %v1184, %v1186
        %v1188 = vadd.f32 %v1184, %v1187
        %vm1189 = vweird.f32 %v1046
        %vm1190 = vweird.f32 %v1184
        %vm1191 = vmor %vm1189, %vm1190
        %v1192 = vsel %vm1191, %v1184, %v1188
        %v1193 = vand.u32 2147483647, %v1046
        %vm1194 = vcmp.eq.f32.partialorder %v1193, 8.507059e+37
        %v1195 = vand.u32 %v1046, 2147483648
        %v1196 = vor.u32 1.1754944e-38, %v1195
        %v1197 = vsel %vm1194, %v1196, %v1192
        %v1198 = vmul.f32 1.0, %v1197
        %v1199 = vrcp.pop %v1047
        %v1200 = vmul.f32 %v1047, %v1199
        %v1201 = vsub.f32 1.0, %v1200
        %v1202 = vmul.f32 %v1199, %v1201
        %v1203 = vadd.f32 %v1199, %v1202
        %vm1204 = vweird.f32 %v1047
        %vm1205 = vweird.f32 %v1199
        %vm1206 = vmor %vm1204, %vm1205
        %v1207 = vsel %vm1206, %v1199, %v1203
        %v1208 = vand.u32 2147483647, %v1047
        %vm1209 = vcmp.eq.f32.partialorder %v1208, 8.507059e+37
        %v1210 = vand.u32 %v1047, 2147483648
        %v1211 = vor.u32 1.1754944e-38, %v1210
        %v1212 = vsel %vm1209, %v1211, %v1207
        %v1213 = vmul.f32 1.0, %v1212
        %v1214 = vrcp.pop %v1048
        %v1215 = vmul.f32 %v1048, %v1214
        %v1216 = vsub.f32 1.0, %v1215
        %v1217 = vmul.f32 %v1214, %v1216
        %v1218 = vadd.f32 %v1214, %v1217
        %vm1219 = vweird.f32 %v1048
        %vm1220 = vweird.f32 %v1214
        %vm1221 = vmor %vm1219, %vm1220
        %v1222 = vsel %vm1221, %v1214, %v1218
        %v1223 = vand.u32 2147483647, %v1048
        %vm1224 = vcmp.eq.f32.partialorder %v1223, 8.507059e+37
        %v1225 = vand.u32 %v1048, 2147483648
        %v1226 = vor.u32 1.1754944e-38, %v1225
        %v1227 = vsel %vm1224, %v1226, %v1222
        %v1228 = vmul.f32 1.0, %v1227
        %v1229 = vmul.f32 %v651, %v1063
        %v1230 = vmul.f32 %v699, %v1078
        %v1231 = vmul.f32 %v653, %v1093
        %v1232 = vmul.f32 %v701, %v1108
        %v1233 = vmul.f32 %v656, %v1123
        %v1234 = vmul.f32 %v704, %v1138
        %v1235 = vmul.f32 %v658, %v1153
        %v1236 = vmul.f32 %v706, %v1168
        %v1237 = vmul.f32 %v661, %v1183
        %v1238 = vmul.f32 %v709, %v1198
        %v1239 = vmul.f32 %v663, %v1213
        %v1240 = vmul.f32 %v711, %v1228
        %v1241 = vmul.f32 %v1229, %v939
        %v1242 = vmul.f32 %v1230, %v987
        %v1243 = vmul.f32 %v1231, %v941
        %v1244 = vmul.f32 %v1232, %v989
        %v1245 = vmul.f32 %v1233, %v944
        %v1246 = vmul.f32 %v1234, %v992
        %v1247 = vmul.f32 %v1235, %v946
        %v1248 = vmul.f32 %v1236, %v994
        %v1249 = vmul.f32 %v1237, %v949
        %v1250 = vmul.f32 %v1238, %v997
        %v1251 = vmul.f32 %v1239, %v951
        %v1252 = vmul.f32 %v1240, %v999
        %v1253 = vpack.c.bf16 %v1243, %v1241
        %v1254 = vpack.c.bf16 %v1244, %v1242
        %v1255 = vpack.c.bf16 %v1247, %v1245
        %v1256 = vpack.c.bf16 %v1248, %v1246
        %v1257 = vpack.c.bf16 %v1251, %v1249
        %v1258 = vpack.c.bf16 %v1252, %v1250
        %v1259 = vld [vmem:[%s330] sm:$0xff]
        %v1260 = vld [vmem:[%s330 + $0x8] sm:$0xff]
        %v1261 = vld [vmem:[%s330 + $0x10] sm:$0xff]
        %v1262 = vld [vmem:[%s330 + $0x18] sm:$0xff]
        %v1263 = vld [vmem:[%s330 + $0x20] sm:$0xff]
        %v1264 = vld [vmem:[%s330 + $0x28] sm:$0xff]
        %v1265 = vld [vmem:[%s330 + $0x30] sm:$0xff]
        %v1266 = vld [vmem:[%s330 + $0x38] sm:$0xff]
        %v1267 = vld [vmem:[%s330 + $0x40] sm:$0xff]
        %v1268 = vld [vmem:[%s330 + $0x48] sm:$0xff]
        %v1269 = vld [vmem:[%s330 + $0x50] sm:$0xff]
        %v1270 = vld [vmem:[%s330 + $0x58] sm:$0xff]
        %v1271 = vld [vmem:[%s330 + $0x60] sm:$0xff]
        %v1272 = vld [vmem:[%s330 + $0x68] sm:$0xff]
        %v1273 = vld [vmem:[%s330 + $0x70] sm:$0xff]
        %v1274 = vld [vmem:[%s330 + $0x78] sm:$0xff]
        %v1275 = vld [vmem:[%s330 + $0x80] sm:$0xff]
        %v1276 = vld [vmem:[%s330 + $0x88] sm:$0xff]
        %v1277 = vld [vmem:[%s330 + $0x90] sm:$0xff]
        %v1278 = vld [vmem:[%s330 + $0x98] sm:$0xff]
        %v1279 = vld [vmem:[%s330 + $0xa0] sm:$0xff]
        %v1280 = vld [vmem:[%s330 + $0xa8] sm:$0xff]
        %v1281 = vld [vmem:[%s330 + $0xb0] sm:$0xff]
        %v1282 = vld [vmem:[%s330 + $0xb8] sm:$0xff]
        %v1283 = vld [vmem:[%s330 + $0xc0] sm:$0xff]
        %v1284 = vld [vmem:[%s330 + $0xc8] sm:$0xff]
        %v1285 = vld [vmem:[%s330 + $0xd0] sm:$0xff]
        %v1286 = vld [vmem:[%s330 + $0xd8] sm:$0xff]
        %v1287 = vld [vmem:[%s330 + $0xe0] sm:$0xff]
        %v1288 = vld [vmem:[%s330 + $0xe8] sm:$0xff]
        %v1289 = vld [vmem:[%s330 + $0xf0] sm:$0xff]
        %v1290 = vld [vmem:[%s330 + $0xf8] sm:$0xff]
        %v1323 = vunpack.c.l.b16 %v1259
        %v1324 = vunpack.c.h.b16 %v1259
        %v1325 = vunpack.c.l.b16 %v1260
        %v1326 = vunpack.c.h.b16 %v1260
        %v1327 = vunpack.c.l.b16 %v1261
        %v1328 = vunpack.c.h.b16 %v1261
        %v1329 = vunpack.c.l.b16 %v1262
        %v1330 = vunpack.c.h.b16 %v1262
        %v1331 = vunpack.c.l.b16 %v1263
        %v1332 = vunpack.c.h.b16 %v1263
        %v1333 = vunpack.c.l.b16 %v1264
        %v1334 = vunpack.c.h.b16 %v1264
        %v1335 = vunpack.c.l.b16 %v1265
        %v1336 = vunpack.c.h.b16 %v1265
        %v1337 = vunpack.c.l.b16 %v1266
        %v1338 = vunpack.c.h.b16 %v1266
        %v1339 = vunpack.c.l.b16 %v1267
        %v1340 = vunpack.c.h.b16 %v1267
        %v1341 = vunpack.c.l.b16 %v1268
        %v1342 = vunpack.c.h.b16 %v1268
        %v1343 = vunpack.c.l.b16 %v1269
        %v1344 = vunpack.c.h.b16 %v1269
        %v1345 = vunpack.c.l.b16 %v1270
        %v1346 = vunpack.c.h.b16 %v1270
        %v1347 = vunpack.c.l.b16 %v1271
        %v1348 = vunpack.c.h.b16 %v1271
        %v1349 = vunpack.c.l.b16 %v1272
        %v1350 = vunpack.c.h.b16 %v1272
        %v1351 = vunpack.c.l.b16 %v1273
        %v1352 = vunpack.c.h.b16 %v1273
        %v1353 = vunpack.c.l.b16 %v1274
        %v1354 = vunpack.c.h.b16 %v1274
        %v1355 = vunpack.c.l.b16 %v1275
        %v1356 = vunpack.c.h.b16 %v1275
        %v1357 = vunpack.c.l.b16 %v1276
        %v1358 = vunpack.c.h.b16 %v1276
        %v1359 = vunpack.c.l.b16 %v1277
        %v1360 = vunpack.c.h.b16 %v1277
        %v1361 = vunpack.c.l.b16 %v1278
        %v1362 = vunpack.c.h.b16 %v1278
        %v1363 = vunpack.c.l.b16 %v1279
        %v1364 = vunpack.c.h.b16 %v1279
        %v1365 = vunpack.c.l.b16 %v1280
        %v1366 = vunpack.c.h.b16 %v1280
        %v1367 = vunpack.c.l.b16 %v1281
        %v1368 = vunpack.c.h.b16 %v1281
        %v1369 = vunpack.c.l.b16 %v1282
        %v1370 = vunpack.c.h.b16 %v1282
        %v1371 = vunpack.c.l.b16 %v1283
        %v1372 = vunpack.c.h.b16 %v1283
        %v1373 = vunpack.c.l.b16 %v1284
        %v1374 = vunpack.c.h.b16 %v1284
        %v1375 = vunpack.c.l.b16 %v1285
        %v1376 = vunpack.c.h.b16 %v1285
        %v1377 = vunpack.c.l.b16 %v1286
        %v1378 = vunpack.c.h.b16 %v1286
        %v1379 = vunpack.c.l.b16 %v1287
        %v1380 = vunpack.c.h.b16 %v1287
        %v1381 = vunpack.c.l.b16 %v1288
        %v1382 = vunpack.c.h.b16 %v1288
        %v1383 = vunpack.c.l.b16 %v1289
        %v1384 = vunpack.c.h.b16 %v1289
        %v1385 = vunpack.c.l.b16 %v1290
        %v1386 = vunpack.c.h.b16 %v1290
        %v1387 = vpack.c.b16 %v1325, %v1323
        %v1388 = vpack.c.b16 %v1326, %v1324
        %v1389 = vpack.c.b16 %v1329, %v1327
        %v1390 = vpack.c.b16 %v1330, %v1328
        %v1391 = vpack.c.b16 %v1333, %v1331
        %v1392 = vpack.c.b16 %v1334, %v1332
        %v1393 = vpack.c.b16 %v1337, %v1335
        %v1394 = vpack.c.b16 %v1338, %v1336
        %v1395 = vpack.c.b16 %v1341, %v1339
        %v1396 = vpack.c.b16 %v1342, %v1340
        %v1397 = vpack.c.b16 %v1345, %v1343
        %v1398 = vpack.c.b16 %v1346, %v1344
        %v1399 = vpack.c.b16 %v1349, %v1347
        %v1400 = vpack.c.b16 %v1350, %v1348
        %v1401 = vpack.c.b16 %v1353, %v1351
        %v1402 = vpack.c.b16 %v1354, %v1352
        %v1403 = vpack.c.b16 %v1357, %v1355
        %v1404 = vpack.c.b16 %v1358, %v1356
        %v1405 = vpack.c.b16 %v1361, %v1359
        %v1406 = vpack.c.b16 %v1362, %v1360
        %v1407 = vpack.c.b16 %v1365, %v1363
        %v1408 = vpack.c.b16 %v1366, %v1364
        %v1409 = vpack.c.b16 %v1369, %v1367
        %v1410 = vpack.c.b16 %v1370, %v1368
        %v1411 = vpack.c.b16 %v1373, %v1371
        %v1412 = vpack.c.b16 %v1374, %v1372
        %v1413 = vpack.c.b16 %v1377, %v1375
        %v1414 = vpack.c.b16 %v1378, %v1376
        %v1415 = vpack.c.b16 %v1381, %v1379
        %v1416 = vpack.c.b16 %v1382, %v1380
        %v1417 = vpack.c.b16 %v1385, %v1383
        %v1418 = vpack.c.b16 %v1386, %v1384
        %1451 = vmatpush.bf16.msra.mxu0 %v1401
        %1452 = vmatpush.bf16.msra.mxu0 %v1399
        %1453 = vmatpush.bf16.msra.mxu0 %v1397
        %1454 = vmatpush.bf16.msra.mxu0 %v1395
        %1455 = vmatpush.bf16.msra.mxu0 %v1393
        %1456 = vmatpush.bf16.msra.mxu0 %v1391
        %1457 = vmatpush.bf16.msra.mxu0 %v1389
        %1458 = vmatpush.bf16.msra.mxu0 %v1387
        %1459 = vmatmul.bf16.gmra.mxu0 %v1253
        %v1460 = vpop.f32.mrf.mxu0
        %v1461 = vadd.f32 0.0, %v1460
        %v1462 = vpop.f32.mrf.mxu0
        %v1463 = vadd.f32 0.0, %v1462
        %1464 = vmatmul.bf16.gmra.mxu0 %v1255
        %v1465 = vpop.f32.mrf.mxu0
        %v1466 = vadd.f32 0.0, %v1465
        %v1467 = vpop.f32.mrf.mxu0
        %v1468 = vadd.f32 0.0, %v1467
        %1469 = vmatmul.bf16.gmra.mxu0 %v1257
        %v1470 = vpop.f32.mrf.mxu0
        %v1471 = vadd.f32 0.0, %v1470
        %v1472 = vpop.f32.mrf.mxu0
        %v1473 = vadd.f32 0.0, %v1472
        %1474 = vdwg.mxu0
        %1475 = vmatpush.bf16.msra.mxu0 %v1417
        %1476 = vmatpush.bf16.msra.mxu0 %v1415
        %1477 = vmatpush.bf16.msra.mxu0 %v1413
        %1478 = vmatpush.bf16.msra.mxu0 %v1411
        %1479 = vmatpush.bf16.msra.mxu0 %v1409
        %1480 = vmatpush.bf16.msra.mxu0 %v1407
        %1481 = vmatpush.bf16.msra.mxu0 %v1405
        %1482 = vmatpush.bf16.msra.mxu0 %v1403
        %1483 = vmatmul.bf16.gmra.mxu0 %v1254
        %v1484 = vpop.f32.mrf.mxu0
        %v1485 = vadd.f32 %v1461, %v1484
        %v1486 = vpop.f32.mrf.mxu0
        %v1487 = vadd.f32 %v1463, %v1486
        %1488 = vmatmul.bf16.gmra.mxu0 %v1256
        %v1489 = vpop.f32.mrf.mxu0
        %v1490 = vadd.f32 %v1466, %v1489
        %v1491 = vpop.f32.mrf.mxu0
        %v1492 = vadd.f32 %v1468, %v1491
        %1493 = vmatmul.bf16.gmra.mxu0 %v1258
        %v1494 = vpop.f32.mrf.mxu0
        %v1495 = vadd.f32 %v1471, %v1494
        %v1496 = vpop.f32.mrf.mxu0
        %v1497 = vadd.f32 %v1473, %v1496
        %1498 = vdwg.mxu0
        %1499 = vmatpush.bf16.msra.mxu0 %v1402
        %1500 = vmatpush.bf16.msra.mxu0 %v1400
        %1501 = vmatpush.bf16.msra.mxu0 %v1398
        %1502 = vmatpush.bf16.msra.mxu0 %v1396
        %1503 = vmatpush.bf16.msra.mxu0 %v1394
        %1504 = vmatpush.bf16.msra.mxu0 %v1392
        %1505 = vmatpush.bf16.msra.mxu0 %v1390
        %1506 = vmatpush.bf16.msra.mxu0 %v1388
        %1507 = vmatmul.bf16.gmra.mxu0 %v1253
        %v1508 = vpop.f32.mrf.mxu0
        %v1509 = vadd.f32 0.0, %v1508
        %v1510 = vpop.f32.mrf.mxu0
        %v1511 = vadd.f32 0.0, %v1510
        %1512 = vmatmul.bf16.gmra.mxu0 %v1255
        %v1513 = vpop.f32.mrf.mxu0
        %v1514 = vadd.f32 0.0, %v1513
        %v1515 = vpop.f32.mrf.mxu0
        %v1516 = vadd.f32 0.0, %v1515
        %1517 = vmatmul.bf16.gmra.mxu0 %v1257
        %v1518 = vpop.f32.mrf.mxu0
        %v1519 = vadd.f32 0.0, %v1518
        %v1520 = vpop.f32.mrf.mxu0
        %v1521 = vadd.f32 0.0, %v1520
        %1522 = vdwg.mxu0
        %1523 = vmatpush.bf16.msra.mxu0 %v1418
        %1524 = vmatpush.bf16.msra.mxu0 %v1416
        %1525 = vmatpush.bf16.msra.mxu0 %v1414
        %1526 = vmatpush.bf16.msra.mxu0 %v1412
        %1527 = vmatpush.bf16.msra.mxu0 %v1410
        %1528 = vmatpush.bf16.msra.mxu0 %v1408
        %1529 = vmatpush.bf16.msra.mxu0 %v1406
        %1530 = vmatpush.bf16.msra.mxu0 %v1404
        %1531 = vmatmul.bf16.gmra.mxu0 %v1254
        %v1532 = vpop.f32.mrf.mxu0
        %v1533 = vadd.f32 %v1509, %v1532
        %v1534 = vpop.f32.mrf.mxu0
        %v1535 = vadd.f32 %v1511, %v1534
        %1536 = vmatmul.bf16.gmra.mxu0 %v1256
        %v1537 = vpop.f32.mrf.mxu0
        %v1538 = vadd.f32 %v1514, %v1537
        %v1539 = vpop.f32.mrf.mxu0
        %v1540 = vadd.f32 %v1516, %v1539
        %1541 = vmatmul.bf16.gmra.mxu0 %v1258
        %v1542 = vpop.f32.mrf.mxu0
        %v1543 = vadd.f32 %v1519, %v1542
        %v1544 = vpop.f32.mrf.mxu0
        %v1545 = vadd.f32 %v1521, %v1544
        %1546 = vdwg.mxu0
        %p1547 = scmp.ne.s32.totalorder %s30, 1
        // Predicated region
        $region57: #{tpu_custom_call.1} parent=35 // pred_check
          %p1548 = pneg %p1547
        $region58: #{tpu_custom_call.1} parent=35 // pred_check_branch
          %1550 = sbr.rel (%p1548) target = $region60
        $region59: #{tpu_custom_call.1} parent=35 // pred_region
          %v1551 = vld [vmem:[#allocation2] sm:$0xff]
          %v1552 = vld [vmem:[#allocation2 + $0x8] sm:$0xff]
          %v1553 = vld [vmem:[#allocation2 + $0x10] sm:$0xff]
          %v1554 = vld [vmem:[#allocation2 + $0x18] sm:$0xff]
          %v1555 = vld [vmem:[#allocation2 + $0x20] sm:$0xff]
          %v1556 = vld [vmem:[#allocation2 + $0x28] sm:$0xff]
          %v1557 = vld [vmem:[#allocation2 + $0x30] sm:$0xff]
          %v1558 = vld [vmem:[#allocation2 + $0x38] sm:$0xff]
          %v1559 = vld [vmem:[#allocation2 + $0x40] sm:$0xff]
          %v1560 = vld [vmem:[#allocation2 + $0x48] sm:$0xff]
          %v1561 = vld [vmem:[#allocation2 + $0x50] sm:$0xff]
          %v1562 = vld [vmem:[#allocation2 + $0x58] sm:$0xff]
          %v1563 = vadd.f32 %v1551, %v1485
          %v1564 = vadd.f32 %v1552, %v1533
          %v1565 = vadd.f32 %v1553, %v1487
          %v1566 = vadd.f32 %v1554, %v1535
          %v1567 = vadd.f32 %v1555, %v1490
          %v1568 = vadd.f32 %v1556, %v1538
          %v1569 = vadd.f32 %v1557, %v1492
          %v1570 = vadd.f32 %v1558, %v1540
          %v1571 = vadd.f32 %v1559, %v1495
          %v1572 = vadd.f32 %v1560, %v1543
          %v1573 = vadd.f32 %v1561, %v1497
          %v1574 = vadd.f32 %v1562, %v1545
          %1575 = vst [vmem:[#allocation2] sm:$0xff] %v1563
          %1576 = vst [vmem:[#allocation2 + $0x8] sm:$0xff] %v1564
          %1577 = vst [vmem:[#allocation2 + $0x10] sm:$0xff] %v1565
          %1578 = vst [vmem:[#allocation2 + $0x18] sm:$0xff] %v1566
          %1579 = vst [vmem:[#allocation2 + $0x20] sm:$0xff] %v1567
          %1580 = vst [vmem:[#allocation2 + $0x28] sm:$0xff] %v1568
          %1581 = vst [vmem:[#allocation2 + $0x30] sm:$0xff] %v1569
          %1582 = vst [vmem:[#allocation2 + $0x38] sm:$0xff] %v1570
          %1583 = vst [vmem:[#allocation2 + $0x40] sm:$0xff] %v1571
          %1584 = vst [vmem:[#allocation2 + $0x48] sm:$0xff] %v1572
          %1585 = vst [vmem:[#allocation2 + $0x50] sm:$0xff] %v1573
          %1586 = vst [vmem:[#allocation2 + $0x58] sm:$0xff] %v1574
        $region60: #{tpu_custom_call.1} parent=35 // pred_fallthru
          _
        %p1587 = scmp.eq.s32.totalorder %s30, 1
        // Predicated region
        $region61: #{tpu_custom_call.1} parent=35 // pred_check
          %p1588 = pneg %p1587
        $region62: #{tpu_custom_call.1} parent=35 // pred_check_branch
          %1590 = sbr.rel (%p1588) target = $region64
        $region63: #{tpu_custom_call.1} parent=35 // pred_region
          %v1591 = vld [vmem:[#allocation2] sm:$0xff]
          %v1592 = vld [vmem:[#allocation2 + $0x8] sm:$0xff]
          %v1593 = vld [vmem:[#allocation2 + $0x10] sm:$0xff]
          %v1594 = vld [vmem:[#allocation2 + $0x18] sm:$0xff]
          %v1595 = vld [vmem:[#allocation2 + $0x20] sm:$0xff]
          %v1596 = vld [vmem:[#allocation2 + $0x28] sm:$0xff]
          %v1597 = vld [vmem:[#allocation2 + $0x30] sm:$0xff]
          %v1598 = vld [vmem:[#allocation2 + $0x38] sm:$0xff]
          %v1599 = vld [vmem:[#allocation2 + $0x40] sm:$0xff]
          %v1600 = vld [vmem:[#allocation2 + $0x48] sm:$0xff]
          %v1601 = vld [vmem:[#allocation2 + $0x50] sm:$0xff]
          %v1602 = vld [vmem:[#allocation2 + $0x58] sm:$0xff]
          %v1603 = vadd.f32 %v1591, %v1485
          %v1604 = vadd.f32 %v1592, %v1533
          %v1605 = vadd.f32 %v1593, %v1487
          %v1606 = vadd.f32 %v1594, %v1535
          %v1607 = vadd.f32 %v1595, %v1490
          %v1608 = vadd.f32 %v1596, %v1538
          %v1609 = vadd.f32 %v1597, %v1492
          %v1610 = vadd.f32 %v1598, %v1540
          %v1611 = vadd.f32 %v1599, %v1495
          %v1612 = vadd.f32 %v1600, %v1543
          %v1613 = vadd.f32 %v1601, %v1497
          %v1614 = vadd.f32 %v1602, %v1545
          %v1615 = vpack.c.bf16 %v1604, %v1603
          %v1616 = vpack.c.bf16 %v1606, %v1605
          %v1617 = vpack.c.bf16 %v1608, %v1607
          %v1618 = vpack.c.bf16 %v1610, %v1609
          %v1619 = vpack.c.bf16 %v1612, %v1611
          %v1620 = vpack.c.bf16 %v1614, %v1613
          %1621 = vst [vmem:[#allocation11] sm:$0xff] %v1615
          %1622 = vst [vmem:[#allocation11 + $0x8] sm:$0xff] %v1616
          %1623 = vst [vmem:[#allocation11 + $0x10] sm:$0xff] %v1617
          %1624 = vst [vmem:[#allocation11 + $0x18] sm:$0xff] %v1618
          %1625 = vst [vmem:[#allocation11 + $0x20] sm:$0xff] %v1619
          %1626 = vst [vmem:[#allocation11 + $0x28] sm:$0xff] %v1620
        $region64: #{tpu_custom_call.1} parent=35 // pred_fallthru
          _
        // Predicated region
        $region65: #{tpu_custom_call.1} parent=35 // pred_check
          %p1627 = pneg %p180
        $region66: #{tpu_custom_call.1} parent=35 // pred_check_branch
          %1629 = sbr.rel (%p1627) target = $region68
        $region67: #{tpu_custom_call.1} parent=35 // pred_region
          %s1630 = smul.u32 6, %s29
          %1632 = vsyncadd [#allocation5], 0
          %s1633 = smul.addr %s1630, 2
          %s1634 = smul.addr %s28, 12
          %s1635 = sadd.s32 %s1633, %s1634
          %s1636 = smul.addr %s1635, 4
          %s1637 = scalar_lea.hbm %s4, %s1636
          %s1638 = sshll.u32 [#allocation11], 4
          %s1639 = int_to_ptr.vmem [resolvable:$true] %s1638
          %s1640 = sshll.u32 %s1637, 4
          %s1641 = int_to_ptr.hbm [resolvable:$true] %s1640
          %1646 = dma.vmem_to_hbm [thread:$0]  %s1639, 768, %s1641, [#allocation5], 128, 128, 8
        $region68: #{tpu_custom_call.1} parent=35 // pred_fallthru
          _
        // Predicated region
        $region69: #{tpu_custom_call.1} parent=35 // pred_check
          %p1647 = pneg %p180
        $region70: #{tpu_custom_call.1} parent=35 // pred_check_branch
          %1649 = sbr.rel (%p1647) target = $region72
        $region71: #{tpu_custom_call.1} parent=35 // pred_region
          %1651 = dma.done [#allocation5], 768
        $region72: #{tpu_custom_call.1} parent=35 // pred_fallthru
          _
      $region36: #{tpu_custom_call.1} parent=5 // pred_fallthru
        _
      %p1652 = scmp.le.s32.totalorder 2, %s18
      // Predicated region
      $region73: #{tpu_custom_call.1} parent=5 // pred_check
        %p1653 = pneg %p1652
      $region74: #{tpu_custom_call.1} parent=5 // pred_check_branch
        %1655 = sbr.rel (%p1653) target = $region76
      $region75: #{tpu_custom_call.1} parent=5 // pred_region
        %s1656 = ssub.s32 %s18, 2
      $region76: #{tpu_custom_call.1} parent=5 // pred_fallthru
        _
    $region6: #{tpu_custom_call.1} parent=1 // loop_footer
      %s22 = sadd.s32 1, %s18
    $region7: #{tpu_custom_call.1} parent=1 // loop_footer_branch
      %17 = sbr.rel target = $region3
    $region8: #{tpu_custom_call.1} parent=1 // loop_exit
      _
    %1657 = vsyncpa [#allocation4], 1
    %s1658 = scalar_lea.sflag [#allocation4], 1
    %1659 = vsyncpa %s1658, 1
    %1660 = vsyncpa [#allocation7], 1
    %s1661 = scalar_lea.sflag [#allocation7], 1
    %1662 = vsyncpa %s1661, 1
    %1663 = vsyncpa [#allocation10], 1
    %s1664 = scalar_lea.sflag [#allocation10], 1
    %1665 = vsyncpa %s1664, 1
    %1666 = vsyncpa [#allocation5], 1
    %s1667 = scalar_lea.sflag [#allocation5], 1
    %1668 = vsyncpa %s1667, 1

</llo_original>
